<compile_context>
chip_gen: v5e
topology: v5e:2x2
jax: 0.10.0
libtpu: 0.0.40
codegen_flags: <defaults>
</compile_context>

<pallas_src>
import functools
import math
from collections import namedtuple

import numpy as np

import jax
import jax.numpy as jnp
from jax.experimental import pallas as pl
from jax.experimental.pallas import tpu as pltpu

NEG_SLOPE = 0.2

# Static per-layer geometry (Python ints only; never part of a traced pytree).
Geom = namedtuple("Geom", "C O k s p H W Hp Wp OH OW")


def make_layer_defs(in_ch, hidden):
    # (C_in, C_out, kernel, stride, padding) -- static Python ints.
    return (
        (in_ch, hidden, 4, 2, 1),
        (hidden, hidden * 2, 4, 2, 1),
        (hidden * 2, 1, 4, 1, 1),
    )


def make_geoms(layer_defs, H, W):
    geoms = []
    h, w = H, W
    for (cin, cout, k, s, p) in layer_defs:
        hp, wp = h + 2 * p, w + 2 * p
        oh = (hp - k) // s + 1
        ow = (wp - k) // s + 1
        geoms.append(Geom(cin, cout, k, s, p, h, w, hp, wp, oh, ow))
        h, w = oh, ow
    return tuple(geoms)


def init_discriminator_params(key, layer_defs):
    """Kaiming-normal(fan_out, leaky_relu) conv init as in Discriminator.__init__."""
    params = []
    for (cin, cout, k, _s, _p) in layer_defs:
        key, wk = jax.random.split(key)
        fan_out = cout * k * k
        std = math.sqrt(2.0) / math.sqrt(fan_out)  # kaiming_normal_ default a=0
        w = std * jax.random.normal(wk, (cout, cin, k, k), dtype=jnp.float32)
        b = jnp.zeros((cout,), dtype=jnp.float32)
        params.append({"w": w, "b": b})
    return params


def preprocess_params(params, geoms):
    """One-time weight repack, hoisted out of the forward path.

    For each layer, build banded (Toeplitz-over-W) bf16 matrices
        mk[kh, w*C + c, ow*O + o] = W[o, c, kh, w - s*ow]   (0 <= w - s*ow < k)
    so a k=4 conv becomes 4 dense (OH, Wp*C) @ (Wp*C, OW*O) matmuls with no
    strided gathers, plus an OW-tiled f32 bias row.
    """
    prep = {}
    for idx, (layer, g) in enumerate(zip(params, geoms), start=1):
        w = np.asarray(layer["w"], np.float32)  # (O, C, kh, kw) PyTorch layout
        b = np.asarray(layer["b"], np.float32)  # (O,)
        mk = np.zeros((g.k, g.Wp * g.C, g.OW * g.O), np.float32)
        for kh in range(g.k):
            for ow in range(g.OW):
                for kw in range(g.k):
                    col = g.s * ow + kw  # padded-input column read by this tap
                    mk[kh,
                       col * g.C:(col + 1) * g.C,
                       ow * g.O:(ow + 1) * g.O] = w[:, :, kh, kw].T
        prep[f"mk{idx}"] = jnp.asarray(mk, dtype=jnp.bfloat16)
        prep[f"b{idx}"] = jnp.asarray(
            np.tile(b, g.OW).reshape(1, g.OW * g.O), dtype=jnp.float32)
    return prep


# -----------------------------------------------------------------------------
# Fused kernel: 3 conv layers + LeakyReLU + LSGAN partial sums, one image/step.
# -----------------------------------------------------------------------------
def _disc_fused_kernel(x_ref, mk1_ref, b1_ref, mk2_ref, b2_ref, mk3_ref, b3_ref,
                       score_ref, sums_ref, pad2_ref, pad3_ref, *, geoms):
    g1, g2, g3 = geoms

    def conv_banded(x_bf16, mk_ref, b_ref, g, act):
        # x_bf16: (Hp, Wp*C) bf16; mk_ref: (k, Wp*C, OW*O) bf16; b_ref: (1, OW*O) f32
        oh_ids = jax.lax.broadcasted_iota(jnp.int32, (g.OH, g.Hp), 0)
        h_ids = jax.lax.broadcasted_iota(jnp.int32, (g.OH, g.Hp), 1)
        acc = jnp.zeros((g.OH, g.OW * g.O), jnp.float32)
        for kh in range(g.k):
            # Row subsample h = s*oh + kh via a 0/1 selection matmul on the MXU
            # (avoids sublane-strided loads entirely; exact selection).
            sel = (h_ids == g.s * oh_ids + kh).astype(jnp.float32).astype(jnp.bfloat16)
            rows = jnp.dot(sel, x_bf16, preferred_element_type=jnp.float32)
            rows = rows.astype(jnp.bfloat16)  # exact round trip: pure selection
            acc = acc + jnp.dot(rows, mk_ref[kh],
                                preferred_element_type=jnp.float32)
        acc = acc + b_ref[...]
        if act:
            acc = jnp.maximum(acc, NEG_SLOPE * acc)  # LeakyReLU(0.2), single VPU max
        return acc  # (OH, OW*O) f32

    # ---- layer 1 (input already padded + flattened to (Hp, Wp*C) by the wrapper)
    y1 = conv_banded(x_ref[...], mk1_ref, b1_ref, g1, act=True)

    # ---- layer 2: zero-pad y1 into bf16 VMEM scratch (next layer's (Hp, Wp*C) form)
    pad2_ref[...] = jnp.zeros_like(pad2_ref)
    pad2_ref[g2.p:g2.p + g1.OH,
             g2.p * g2.C:(g2.p + g1.OW) * g2.C] = y1.astype(jnp.bfloat16)
    y2 = conv_banded(pad2_ref[...], mk2_ref, b2_ref, g2, act=True)

    # ---- layer 3 (head, O=1, no activation)
    pad3_ref[...] = jnp.zeros_like(pad3_ref)
    pad3_ref[g3.p:g3.p + g2.OH,
             g3.p * g3.C:(g3.p + g2.OW) * g3.C] = y2.astype(jnp.bfloat16)
    y3 = conv_banded(pad3_ref[...], mk3_ref, b3_ref, g3, act=False)  # (OH3, OW3)

    score_ref[...] = y3.astype(score_ref.dtype)

    # ---- fused LSGAN partial sums for this image (combined in the wrapper).
    sums_ref[0:1, 0:1] = jnp.sum((y3 - 1.0) ** 2, keepdims=True)
    sums_ref[0:1, 1:2] = jnp.sum(y3 * y3, keepdims=True)


# -----------------------------------------------------------------------------
# Discriminator forward: model (PatchGAN) + lossfunction (LSGAN), one pallas_call.
# -----------------------------------------------------------------------------
def discriminator_forward(prep, outputs, labels, hmap, *, geoms):
    g1, g2, g3 = geoms
    N = outputs.shape[0]
    B = 2 * N

    # Batch fake and real passes along N -> one fused model+loss kernel.
    x = jnp.concatenate(
        [jnp.concatenate([outputs, hmap], axis=1),
         jnp.concatenate([labels, hmap], axis=1)], axis=0)        # (2N, C, H, W)
    x = jnp.transpose(x, (0, 2, 3, 1))                            # NHWC
    x = jnp.pad(x, ((0, 0), (g1.p, g1.p), (g1.p, g1.p), (0, 0)))  # spatial pad
    x = x.reshape(B, g1.Hp, g1.Wp * g1.C).astype(jnp.bfloat16)    # (2N, Hp, Wp*C)

    scores, sums = pl.pallas_call(
        functools.partial(_disc_fused_kernel, geoms=geoms),
        out_shape=(
            jax.ShapeDtypeStruct((B, g3.OH, g3.OW), jnp.float32),  # head score maps
            jax.ShapeDtypeStruct((B, 1, 2), jnp.float32),          # per-image loss sums
        ),
        grid=(B,),
        in_specs=[
            pl.BlockSpec((None, g1.Hp, g1.Wp * g1.C), lambda i: (i, 0, 0)),
            # Banded weights / biases are resident across the whole grid.
            pl.BlockSpec((g1.k, g1.Wp * g1.C, g1.OW * g1.O), lambda i: (0, 0, 0)),
            pl.BlockSpec((1, g1.OW * g1.O), lambda i: (0, 0)),
            pl.BlockSpec((g2.k, g2.Wp * g2.C, g2.OW * g2.O), lambda i: (0, 0, 0)),
            pl.BlockSpec((1, g2.OW * g2.O), lambda i: (0, 0)),
            pl.BlockSpec((g3.k, g3.Wp * g3.C, g3.OW * g3.O), lambda i: (0, 0, 0)),
            pl.BlockSpec((1, g3.OW * g3.O), lambda i: (0, 0)),
        ],
        out_specs=(
            pl.BlockSpec((None, g3.OH, g3.OW), lambda i: (i, 0, 0)),
            pl.BlockSpec((None, 1, 2), lambda i: (i, 0, 0)),
        ),
        scratch_shapes=[
            pltpu.VMEM((g2.Hp, g2.Wp * g2.C), jnp.bfloat16),  # padded layer-2 input
            pltpu.VMEM((g3.Hp, g3.Wp * g3.C), jnp.bfloat16),  # padded layer-3 input
        ],
        compiler_params=pltpu.CompilerParams(
            dimension_semantics=("parallel",)),  # >=2 grid steps feed both v7x TCs
    )(x, prep["mk1"], prep["b1"], prep["mk2"], prep["b2"], prep["mk3"], prep["b3"])

    # Head has a single channel, so NHWC == NCHW here: no transposes needed.
    fake = scores[:N].reshape(N, 1, g3.OH, g3.OW)
    real = scores[N:].reshape(N, 1, g3.OH, g3.OW)

    # Final LSGAN combine over 2N*2 scalars (the per-element reductions ran in-kernel).
    count = float(N * g3.OH * g3.OW)
    loss_G = jnp.sum(sums[:N, 0, 0]) / count
    loss_D = 0.5 * (jnp.sum(sums[N:, 0, 0]) + jnp.sum(sums[:N, 0, 1])) / count
    return fake, real, loss_G, loss_D


# -----------------------------------------------------------------------------
# Pure-JAX reference (mirrors the kernel's bf16 rounding points, f32 accumulation).
# -----------------------------------------------------------------------------
def reference_forward(params, geoms, outputs, labels, hmap):
    N = outputs.shape[0]
    x = jnp.concatenate(
        [jnp.concatenate([outputs, hmap], axis=1),
         jnp.concatenate([labels, hmap], axis=1)], axis=0)
    n_layers = len(params)
    for li, (layer, g) in enumerate(zip(params, geoms)):
        xb = x.astype(jnp.bfloat16).astype(jnp.float32)
        wb = layer["w"].astype(jnp.bfloat16).astype(jnp.float32)
        y = jax.lax.conv_general_dilated(
            xb, wb, window_strides=(g.s, g.s),
            padding=[(g.p, g.p), (g.p, g.p)],
            dimension_numbers=("NCHW", "OIHW", "NCHW"),
            precision=jax.lax.Precision.HIGHEST)
        y = y + layer["b"].reshape(1, -1, 1, 1)
        if li < n_layers - 1:
            y = jnp.maximum(y, NEG_SLOPE * y)
        x = y
    fake, real = x[:N], x[N:]
    loss_G = jnp.mean((fake - 1.0) ** 2)
    loss_D = 0.5 * (jnp.mean((real - 1.0) ** 2) + jnp.mean(fake ** 2))
    return fake, real, loss_G, loss_D


# -----------------------------------------------------------------------------
if __name__ == "__main__":
    key = jax.random.PRNGKey(0)
    k_par, k_out, k_lab, k_hm = jax.random.split(key, 4)

    N, C_img, C_hmap, HW = 2, 3, 1, 16
    hidden = 8
    layer_defs = make_layer_defs(C_img + C_hmap, hidden)
    geoms = make_geoms(layer_defs, HW, HW)

    outputs = jax.random.normal(k_out, (N, C_img, HW, HW), dtype=jnp.float32)
    labels = jax.random.normal(k_lab, (N, C_img, HW, HW), dtype=jnp.float32)
    hmap = jax.random.normal(k_hm, (N, C_hmap, HW, HW), dtype=jnp.float32)

    params = init_discriminator_params(k_par, layer_defs)
    prep = preprocess_params(params, geoms)  # one-time weight repack (off step path)

    fwd = jax.jit(functools.partial(discriminator_forward, geoms=geoms))
    fake, real, loss_G, loss_D = fwd(prep, outputs, labels, hmap)
    jax.block_until_ready((fake, real, loss_G, loss_D))

    # 16 -> 8 -> 4 -> 3 spatial; head has 1 output channel.
    assert fake.shape == (N, 1, 3, 3), fake.shape
    assert real.shape == fake.shape
    assert loss_G.shape == () and loss_D.shape == ()
    assert bool(jnp.isfinite(loss_G)) and bool(jnp.isfinite(loss_D))

    # Correctness vs. pure-JAX reference (same bf16 rounding points).
    f_ref, r_ref, g_ref, d_ref = reference_forward(params, geoms, outputs, labels, hmap)
    assert bool(jnp.allclose(fake, f_ref, atol=1e-2, rtol=1e-2)), "fake mismatch"
    assert bool(jnp.allclose(real, r_ref, atol=1e-2, rtol=1e-2)), "real mismatch"
    assert bool(jnp.allclose(loss_G, g_ref, atol=1e-2, rtol=1e-2)), "loss_G mismatch"
    assert bool(jnp.allclose(loss_D, d_ref, atol=1e-2, rtol=1e-2)), "loss_D mismatch"

    print("KERNEL_OK")
</pallas_src>

<mosaic_0001>
module attributes {stable_mosaic.version = 11 : i64} {
  func.func @_disc_fused_kernel(%arg0: i32, %arg1: memref<1x18x72xbf16, #tpu.memory_space<vmem>>, %arg2: memref<4x72x64xbf16, #tpu.memory_space<vmem>>, %arg3: memref<1x64xf32, #tpu.memory_space<vmem>>, %arg4: memref<4x80x64xbf16, #tpu.memory_space<vmem>>, %arg5: memref<1x64xf32, #tpu.memory_space<vmem>>, %arg6: memref<4x96x3xbf16, #tpu.memory_space<vmem>>, %arg7: memref<1x3xf32, #tpu.memory_space<vmem>>, %arg8: memref<1x3x3xf32, #tpu.memory_space<vmem>>, %arg9: memref<1x1x2xf32, #tpu.memory_space<vmem>>, %arg10: memref<10x80xbf16, #tpu.memory_space<vmem>>, %arg11: memref<6x96xbf16, #tpu.memory_space<vmem>>) attributes {dimension_semantics = [#tpu.dimension_semantics<parallel>], iteration_bounds = array<i64: 4>, scalar_prefetch = 0 : i64, scratch_operands = 2 : i64, tpu.core_type = #tpu.core_type<tc>, window_params = [{transform_indices = @transform_0, window_bounds = array<i64: 1, 18, 72>}, {pipeline_mode = #tpu.pipeline_mode<synchronous>, transform_indices = @transform_1, window_bounds = array<i64: 4, 72, 64>}, {pipeline_mode = #tpu.pipeline_mode<synchronous>, transform_indices = @transform_2, window_bounds = array<i64: 1, 64>}, {pipeline_mode = #tpu.pipeline_mode<synchronous>, transform_indices = @transform_3, window_bounds = array<i64: 4, 80, 64>}, {pipeline_mode = #tpu.pipeline_mode<synchronous>, transform_indices = @transform_4, window_bounds = array<i64: 1, 64>}, {pipeline_mode = #tpu.pipeline_mode<synchronous>, transform_indices = @transform_5, window_bounds = array<i64: 4, 96, 3>}, {pipeline_mode = #tpu.pipeline_mode<synchronous>, transform_indices = @transform_6, window_bounds = array<i64: 1, 3>}, {transform_indices = @transform_7, window_bounds = array<i64: 1, 3, 3>}, {transform_indices = @transform_8, window_bounds = array<i64: 1, 1, 2>}]} {
    %c0 = arith.constant 0 : index
    %c0_0 = arith.constant 0 : index
    %c0_1 = arith.constant 0 : index
    %0 = vector.load %arg1[%c0, %c0_0, %c0_1] : memref<1x18x72xbf16, #tpu.memory_space<vmem>>, vector<1x18x72xbf16>
    %1 = vector.shape_cast %0 : vector<1x18x72xbf16> to vector<18x72xbf16>
    %2 = tpu.iota {dimensions = array<i32: 0>} : vector<8x18xi32>
    %3 = tpu.iota {dimensions = array<i32: 1>} : vector<8x18xi32>
    %cst = arith.constant 0.000000e+00 : f32
    %4 = vector.broadcast %cst : f32 to vector<8x64xf32>
    %c2_i32 = arith.constant 2 : i32
    %5 = vector.broadcast %c2_i32 : i32 to vector<8x18xi32>
    %6 = arith.muli %5, %2 : vector<8x18xi32>
    %c0_i32 = arith.constant 0 : i32
    %7 = vector.broadcast %c0_i32 : i32 to vector<8x18xi32>
    %8 = arith.addi %6, %7 : vector<8x18xi32>
    %9 = arith.cmpi eq, %3, %8 : vector<8x18xi32>
    %10 = arith.extui %9 : vector<8x18xi1> to vector<8x18xi32>
    %11 = arith.sitofp %10 : vector<8x18xi32> to vector<8x18xf32>
    %12 = arith.truncf %11 : vector<8x18xf32> to vector<8x18xbf16>
    %cst_2 = arith.constant dense<0.000000e+00> : vector<8x72xf32>
    %13 = tpu.matmul %12, %1, %cst_2 {dimension_numbers = #tpu.dot_dimension_numbers<[1], [0], [0], [1], [0, 0, 1, 1], [], []>} : vector<8x18xbf16>, vector<18x72xbf16>, vector<8x72xf32> -> vector<8x72xf32>
    %14 = arith.truncf %13 : vector<8x72xf32> to vector<8x72xbf16>
    %c0_3 = arith.constant 0 : index
    %c0_4 = arith.constant 0 : index
    %c0_5 = arith.constant 0 : index
    %15 = vector.load %arg2[%c0_3, %c0_4, %c0_5] : memref<4x72x64xbf16, #tpu.memory_space<vmem>>, vector<1x72x64xbf16>
    %16 = vector.shape_cast %15 : vector<1x72x64xbf16> to vector<72x64xbf16>
    %cst_6 = arith.constant dense<0.000000e+00> : vector<8x64xf32>
    %17 = tpu.matmul %14, %16, %cst_6 {dimension_numbers = #tpu.dot_dimension_numbers<[1], [0], [0], [1], [0, 0, 1, 1], [], []>} : vector<8x72xbf16>, vector<72x64xbf16>, vector<8x64xf32> -> vector<8x64xf32>
    %18 = arith.addf %4, %17 : vector<8x64xf32>
    %c2_i32_7 = arith.constant 2 : i32
    %19 = vector.broadcast %c2_i32_7 : i32 to vector<8x18xi32>
    %20 = arith.muli %19, %2 : vector<8x18xi32>
    %c1_i32 = arith.constant 1 : i32
    %21 = vector.broadcast %c1_i32 : i32 to vector<8x18xi32>
    %22 = arith.addi %20, %21 : vector<8x18xi32>
    %23 = arith.cmpi eq, %3, %22 : vector<8x18xi32>
    %24 = arith.extui %23 : vector<8x18xi1> to vector<8x18xi32>
    %25 = arith.sitofp %24 : vector<8x18xi32> to vector<8x18xf32>
    %26 = arith.truncf %25 : vector<8x18xf32> to vector<8x18xbf16>
    %cst_8 = arith.constant dense<0.000000e+00> : vector<8x72xf32>
    %27 = tpu.matmul %26, %1, %cst_8 {dimension_numbers = #tpu.dot_dimension_numbers<[1], [0], [0], [1], [0, 0, 1, 1], [], []>} : vector<8x18xbf16>, vector<18x72xbf16>, vector<8x72xf32> -> vector<8x72xf32>
    %28 = arith.truncf %27 : vector<8x72xf32> to vector<8x72xbf16>
    %c1 = arith.constant 1 : index
    %c0_9 = arith.constant 0 : index
    %c0_10 = arith.constant 0 : index
    %29 = vector.load %arg2[%c1, %c0_9, %c0_10] : memref<4x72x64xbf16, #tpu.memory_space<vmem>>, vector<1x72x64xbf16>
    %30 = vector.shape_cast %29 : vector<1x72x64xbf16> to vector<72x64xbf16>
    %cst_11 = arith.constant dense<0.000000e+00> : vector<8x64xf32>
    %31 = tpu.matmul %28, %30, %cst_11 {dimension_numbers = #tpu.dot_dimension_numbers<[1], [0], [0], [1], [0, 0, 1, 1], [], []>} : vector<8x72xbf16>, vector<72x64xbf16>, vector<8x64xf32> -> vector<8x64xf32>
    %32 = arith.addf %18, %31 : vector<8x64xf32>
    %c2_i32_12 = arith.constant 2 : i32
    %33 = vector.broadcast %c2_i32_12 : i32 to vector<8x18xi32>
    %34 = arith.muli %33, %2 : vector<8x18xi32>
    %c2_i32_13 = arith.constant 2 : i32
    %35 = vector.broadcast %c2_i32_13 : i32 to vector<8x18xi32>
    %36 = arith.addi %34, %35 : vector<8x18xi32>
    %37 = arith.cmpi eq, %3, %36 : vector<8x18xi32>
    %38 = arith.extui %37 : vector<8x18xi1> to vector<8x18xi32>
    %39 = arith.sitofp %38 : vector<8x18xi32> to vector<8x18xf32>
    %40 = arith.truncf %39 : vector<8x18xf32> to vector<8x18xbf16>
    %cst_14 = arith.constant dense<0.000000e+00> : vector<8x72xf32>
    %41 = tpu.matmul %40, %1, %cst_14 {dimension_numbers = #tpu.dot_dimension_numbers<[1], [0], [0], [1], [0, 0, 1, 1], [], []>} : vector<8x18xbf16>, vector<18x72xbf16>, vector<8x72xf32> -> vector<8x72xf32>
    %42 = arith.truncf %41 : vector<8x72xf32> to vector<8x72xbf16>
    %c2 = arith.constant 2 : index
    %c0_15 = arith.constant 0 : index
    %c0_16 = arith.constant 0 : index
    %43 = vector.load %arg2[%c2, %c0_15, %c0_16] : memref<4x72x64xbf16, #tpu.memory_space<vmem>>, vector<1x72x64xbf16>
    %44 = vector.shape_cast %43 : vector<1x72x64xbf16> to vector<72x64xbf16>
    %cst_17 = arith.constant dense<0.000000e+00> : vector<8x64xf32>
    %45 = tpu.matmul %42, %44, %cst_17 {dimension_numbers = #tpu.dot_dimension_numbers<[1], [0], [0], [1], [0, 0, 1, 1], [], []>} : vector<8x72xbf16>, vector<72x64xbf16>, vector<8x64xf32> -> vector<8x64xf32>
    %46 = arith.addf %32, %45 : vector<8x64xf32>
    %c2_i32_18 = arith.constant 2 : i32
    %47 = vector.broadcast %c2_i32_18 : i32 to vector<8x18xi32>
    %48 = arith.muli %47, %2 : vector<8x18xi32>
    %c3_i32 = arith.constant 3 : i32
    %49 = vector.broadcast %c3_i32 : i32 to vector<8x18xi32>
    %50 = arith.addi %48, %49 : vector<8x18xi32>
    %51 = arith.cmpi eq, %3, %50 : vector<8x18xi32>
    %52 = arith.extui %51 : vector<8x18xi1> to vector<8x18xi32>
    %53 = arith.sitofp %52 : vector<8x18xi32> to vector<8x18xf32>
    %54 = arith.truncf %53 : vector<8x18xf32> to vector<8x18xbf16>
    %cst_19 = arith.constant dense<0.000000e+00> : vector<8x72xf32>
    %55 = tpu.matmul %54, %1, %cst_19 {dimension_numbers = #tpu.dot_dimension_numbers<[1], [0], [0], [1], [0, 0, 1, 1], [], []>} : vector<8x18xbf16>, vector<18x72xbf16>, vector<8x72xf32> -> vector<8x72xf32>
    %56 = arith.truncf %55 : vector<8x72xf32> to vector<8x72xbf16>
    %c3 = arith.constant 3 : index
    %c0_20 = arith.constant 0 : index
    %c0_21 = arith.constant 0 : index
    %57 = vector.load %arg2[%c3, %c0_20, %c0_21] : memref<4x72x64xbf16, #tpu.memory_space<vmem>>, vector<1x72x64xbf16>
    %58 = vector.shape_cast %57 : vector<1x72x64xbf16> to vector<72x64xbf16>
    %cst_22 = arith.constant dense<0.000000e+00> : vector<8x64xf32>
    %59 = tpu.matmul %56, %58, %cst_22 {dimension_numbers = #tpu.dot_dimension_numbers<[1], [0], [0], [1], [0, 0, 1, 1], [], []>} : vector<8x72xbf16>, vector<72x64xbf16>, vector<8x64xf32> -> vector<8x64xf32>
    %60 = arith.addf %46, %59 : vector<8x64xf32>
    %c0_23 = arith.constant 0 : index
    %c0_24 = arith.constant 0 : index
    %61 = vector.load %arg3[%c0_23, %c0_24] : memref<1x64xf32, #tpu.memory_space<vmem>>, vector<1x64xf32>
    %62 = vector.broadcast %61 : vector<1x64xf32> to vector<8x64xf32>
    %63 = arith.addf %60, %62 : vector<8x64xf32>
    %cst_25 = arith.constant 2.000000e-01 : f32
    %64 = vector.broadcast %cst_25 : f32 to vector<8x64xf32>
    %65 = arith.mulf %64, %63 : vector<8x64xf32>
    %66 = arith.maximumf %63, %65 : vector<8x64xf32>
    %cst_26 = arith.constant 0.000000e+00 : bf16
    %67 = vector.broadcast %cst_26 : bf16 to vector<10x80xbf16>
    %c0_27 = arith.constant 0 : index
    %c0_28 = arith.constant 0 : index
    %68 = vector.load %arg10[%c0_27, %c0_28] : memref<10x80xbf16, #tpu.memory_space<vmem>>, vector<10x80xbf16>
    tpu.vector_store %arg10[%c0_27, %c0_28], %67 {strides = array<i32>} : memref<10x80xbf16, #tpu.memory_space<vmem>>, vector<10x80xbf16>,
    %69 = arith.truncf %66 : vector<8x64xf32> to vector<8x64xbf16>
    %c1_29 = arith.constant 1 : index
    %c8 = arith.constant 8 : index
    %70 = vector.load %arg10[%c1_29, %c8] : memref<10x80xbf16, #tpu.memory_space<vmem>>, vector<8x64xbf16>
    tpu.vector_store %arg10[%c1_29, %c8], %69 {strides = array<i32>} : memref<10x80xbf16, #tpu.memory_space<vmem>>, vector<8x64xbf16>,
    %c0_30 = arith.constant 0 : index
    %c0_31 = arith.constant 0 : index
    %71 = vector.load %arg10[%c0_30, %c0_31] : memref<10x80xbf16, #tpu.memory_space<vmem>>, vector<10x80xbf16>
    %72 = tpu.iota {dimensions = array<i32: 0>} : vector<4x10xi32>
    %73 = tpu.iota {dimensions = array<i32: 1>} : vector<4x10xi32>
    %cst_32 = arith.constant 0.000000e+00 : f32
    %74 = vector.broadcast %cst_32 : f32 to vector<4x64xf32>
    %c2_i32_33 = arith.constant 2 : i32
    %75 = vector.broadcast %c2_i32_33 : i32 to vector<4x10xi32>
    %76 = arith.muli %75, %72 : vector<4x10xi32>
    %c0_i32_34 = arith.constant 0 : i32
    %77 = vector.broadcast %c0_i32_34 : i32 to vector<4x10xi32>
    %78 = arith.addi %76, %77 : vector<4x10xi32>
    %79 = arith.cmpi eq, %73, %78 : vector<4x10xi32>
    %80 = arith.extui %79 : vector<4x10xi1> to vector<4x10xi32>
    %81 = arith.sitofp %80 : vector<4x10xi32> to vector<4x10xf32>
    %82 = arith.truncf %81 : vector<4x10xf32> to vector<4x10xbf16>
    %cst_35 = arith.constant dense<0.000000e+00> : vector<4x80xf32>
    %83 = tpu.matmul %82, %71, %cst_35 {dimension_numbers = #tpu.dot_dimension_numbers<[1], [0], [0], [1], [0, 0, 1, 1], [], []>} : vector<4x10xbf16>, vector<10x80xbf16>, vector<4x80xf32> -> vector<4x80xf32>
    %84 = arith.truncf %83 : vector<4x80xf32> to vector<4x80xbf16>
    %c0_36 = arith.constant 0 : index
    %c0_37 = arith.constant 0 : index
    %c0_38 = arith.constant 0 : index
    %85 = vector.load %arg4[%c0_36, %c0_37, %c0_38] : memref<4x80x64xbf16, #tpu.memory_space<vmem>>, vector<1x80x64xbf16>
    %86 = vector.shape_cast %85 : vector<1x80x64xbf16> to vector<80x64xbf16>
    %cst_39 = arith.constant dense<0.000000e+00> : vector<4x64xf32>
    %87 = tpu.matmul %84, %86, %cst_39 {dimension_numbers = #tpu.dot_dimension_numbers<[1], [0], [0], [1], [0, 0, 1, 1], [], []>} : vector<4x80xbf16>, vector<80x64xbf16>, vector<4x64xf32> -> vector<4x64xf32>
    %88 = arith.addf %74, %87 : vector<4x64xf32>
    %c2_i32_40 = arith.constant 2 : i32
    %89 = vector.broadcast %c2_i32_40 : i32 to vector<4x10xi32>
    %90 = arith.muli %89, %72 : vector<4x10xi32>
    %c1_i32_41 = arith.constant 1 : i32
    %91 = vector.broadcast %c1_i32_41 : i32 to vector<4x10xi32>
    %92 = arith.addi %90, %91 : vector<4x10xi32>
    %93 = arith.cmpi eq, %73, %92 : vector<4x10xi32>
    %94 = arith.extui %93 : vector<4x10xi1> to vector<4x10xi32>
    %95 = arith.sitofp %94 : vector<4x10xi32> to vector<4x10xf32>
    %96 = arith.truncf %95 : vector<4x10xf32> to vector<4x10xbf16>
    %cst_42 = arith.constant dense<0.000000e+00> : vector<4x80xf32>
    %97 = tpu.matmul %96, %71, %cst_42 {dimension_numbers = #tpu.dot_dimension_numbers<[1], [0], [0], [1], [0, 0, 1, 1], [], []>} : vector<4x10xbf16>, vector<10x80xbf16>, vector<4x80xf32> -> vector<4x80xf32>
    %98 = arith.truncf %97 : vector<4x80xf32> to vector<4x80xbf16>
    %c1_43 = arith.constant 1 : index
    %c0_44 = arith.constant 0 : index
    %c0_45 = arith.constant 0 : index
    %99 = vector.load %arg4[%c1_43, %c0_44, %c0_45] : memref<4x80x64xbf16, #tpu.memory_space<vmem>>, vector<1x80x64xbf16>
    %100 = vector.shape_cast %99 : vector<1x80x64xbf16> to vector<80x64xbf16>
    %cst_46 = arith.constant dense<0.000000e+00> : vector<4x64xf32>
    %101 = tpu.matmul %98, %100, %cst_46 {dimension_numbers = #tpu.dot_dimension_numbers<[1], [0], [0], [1], [0, 0, 1, 1], [], []>} : vector<4x80xbf16>, vector<80x64xbf16>, vector<4x64xf32> -> vector<4x64xf32>
    %102 = arith.addf %88, %101 : vector<4x64xf32>
    %c2_i32_47 = arith.constant 2 : i32
    %103 = vector.broadcast %c2_i32_47 : i32 to vector<4x10xi32>
    %104 = arith.muli %103, %72 : vector<4x10xi32>
    %c2_i32_48 = arith.constant 2 : i32
    %105 = vector.broadcast %c2_i32_48 : i32 to vector<4x10xi32>
    %106 = arith.addi %104, %105 : vector<4x10xi32>
    %107 = arith.cmpi eq, %73, %106 : vector<4x10xi32>
    %108 = arith.extui %107 : vector<4x10xi1> to vector<4x10xi32>
    %109 = arith.sitofp %108 : vector<4x10xi32> to vector<4x10xf32>
    %110 = arith.truncf %109 : vector<4x10xf32> to vector<4x10xbf16>
    %cst_49 = arith.constant dense<0.000000e+00> : vector<4x80xf32>
    %111 = tpu.matmul %110, %71, %cst_49 {dimension_numbers = #tpu.dot_dimension_numbers<[1], [0], [0], [1], [0, 0, 1, 1], [], []>} : vector<4x10xbf16>, vector<10x80xbf16>, vector<4x80xf32> -> vector<4x80xf32>
    %112 = arith.truncf %111 : vector<4x80xf32> to vector<4x80xbf16>
    %c2_50 = arith.constant 2 : index
    %c0_51 = arith.constant 0 : index
    %c0_52 = arith.constant 0 : index
    %113 = vector.load %arg4[%c2_50, %c0_51, %c0_52] : memref<4x80x64xbf16, #tpu.memory_space<vmem>>, vector<1x80x64xbf16>
    %114 = vector.shape_cast %113 : vector<1x80x64xbf16> to vector<80x64xbf16>
    %cst_53 = arith.constant dense<0.000000e+00> : vector<4x64xf32>
    %115 = tpu.matmul %112, %114, %cst_53 {dimension_numbers = #tpu.dot_dimension_numbers<[1], [0], [0], [1], [0, 0, 1, 1], [], []>} : vector<4x80xbf16>, vector<80x64xbf16>, vector<4x64xf32> -> vector<4x64xf32>
    %116 = arith.addf %102, %115 : vector<4x64xf32>
    %c2_i32_54 = arith.constant 2 : i32
    %117 = vector.broadcast %c2_i32_54 : i32 to vector<4x10xi32>
    %118 = arith.muli %117, %72 : vector<4x10xi32>
    %c3_i32_55 = arith.constant 3 : i32
    %119 = vector.broadcast %c3_i32_55 : i32 to vector<4x10xi32>
    %120 = arith.addi %118, %119 : vector<4x10xi32>
    %121 = arith.cmpi eq, %73, %120 : vector<4x10xi32>
    %122 = arith.extui %121 : vector<4x10xi1> to vector<4x10xi32>
    %123 = arith.sitofp %122 : vector<4x10xi32> to vector<4x10xf32>
    %124 = arith.truncf %123 : vector<4x10xf32> to vector<4x10xbf16>
    %cst_56 = arith.constant dense<0.000000e+00> : vector<4x80xf32>
    %125 = tpu.matmul %124, %71, %cst_56 {dimension_numbers = #tpu.dot_dimension_numbers<[1], [0], [0], [1], [0, 0, 1, 1], [], []>} : vector<4x10xbf16>, vector<10x80xbf16>, vector<4x80xf32> -> vector<4x80xf32>
    %126 = arith.truncf %125 : vector<4x80xf32> to vector<4x80xbf16>
    %c3_57 = arith.constant 3 : index
    %c0_58 = arith.constant 0 : index
    %c0_59 = arith.constant 0 : index
    %127 = vector.load %arg4[%c3_57, %c0_58, %c0_59] : memref<4x80x64xbf16, #tpu.memory_space<vmem>>, vector<1x80x64xbf16>
    %128 = vector.shape_cast %127 : vector<1x80x64xbf16> to vector<80x64xbf16>
    %cst_60 = arith.constant dense<0.000000e+00> : vector<4x64xf32>
    %129 = tpu.matmul %126, %128, %cst_60 {dimension_numbers = #tpu.dot_dimension_numbers<[1], [0], [0], [1], [0, 0, 1, 1], [], []>} : vector<4x80xbf16>, vector<80x64xbf16>, vector<4x64xf32> -> vector<4x64xf32>
    %130 = arith.addf %116, %129 : vector<4x64xf32>
    %c0_61 = arith.constant 0 : index
    %c0_62 = arith.constant 0 : index
    %131 = vector.load %arg5[%c0_61, %c0_62] : memref<1x64xf32, #tpu.memory_space<vmem>>, vector<1x64xf32>
    %132 = vector.broadcast %131 : vector<1x64xf32> to vector<4x64xf32>
    %133 = arith.addf %130, %132 : vector<4x64xf32>
    %cst_63 = arith.constant 2.000000e-01 : f32
    %134 = vector.broadcast %cst_63 : f32 to vector<4x64xf32>
    %135 = arith.mulf %134, %133 : vector<4x64xf32>
    %136 = arith.maximumf %133, %135 : vector<4x64xf32>
    %cst_64 = arith.constant 0.000000e+00 : bf16
    %137 = vector.broadcast %cst_64 : bf16 to vector<6x96xbf16>
    %c0_65 = arith.constant 0 : index
    %c0_66 = arith.constant 0 : index
    %138 = vector.load %arg11[%c0_65, %c0_66] : memref<6x96xbf16, #tpu.memory_space<vmem>>, vector<6x96xbf16>
    tpu.vector_store %arg11[%c0_65, %c0_66], %137 {strides = array<i32>} : memref<6x96xbf16, #tpu.memory_space<vmem>>, vector<6x96xbf16>,
    %139 = arith.truncf %136 : vector<4x64xf32> to vector<4x64xbf16>
    %c1_67 = arith.constant 1 : index
    %c16 = arith.constant 16 : index
    %140 = vector.load %arg11[%c1_67, %c16] : memref<6x96xbf16, #tpu.memory_space<vmem>>, vector<4x64xbf16>
    tpu.vector_store %arg11[%c1_67, %c16], %139 {strides = array<i32>} : memref<6x96xbf16, #tpu.memory_space<vmem>>, vector<4x64xbf16>,
    %c0_68 = arith.constant 0 : index
    %c0_69 = arith.constant 0 : index
    %141 = vector.load %arg11[%c0_68, %c0_69] : memref<6x96xbf16, #tpu.memory_space<vmem>>, vector<6x96xbf16>
    %142 = tpu.iota {dimensions = array<i32: 0>} : vector<3x6xi32>
    %143 = tpu.iota {dimensions = array<i32: 1>} : vector<3x6xi32>
    %cst_70 = arith.constant 0.000000e+00 : f32
    %144 = vector.broadcast %cst_70 : f32 to vector<3x3xf32>
    %c1_i32_71 = arith.constant 1 : i32
    %145 = vector.broadcast %c1_i32_71 : i32 to vector<3x6xi32>
    %146 = arith.muli %145, %142 : vector<3x6xi32>
    %c0_i32_72 = arith.constant 0 : i32
    %147 = vector.broadcast %c0_i32_72 : i32 to vector<3x6xi32>
    %148 = arith.addi %146, %147 : vector<3x6xi32>
    %149 = arith.cmpi eq, %143, %148 : vector<3x6xi32>
    %150 = arith.extui %149 : vector<3x6xi1> to vector<3x6xi32>
    %151 = arith.sitofp %150 : vector<3x6xi32> to vector<3x6xf32>
    %152 = arith.truncf %151 : vector<3x6xf32> to vector<3x6xbf16>
    %cst_73 = arith.constant dense<0.000000e+00> : vector<3x96xf32>
    %153 = tpu.matmul %152, %141, %cst_73 {dimension_numbers = #tpu.dot_dimension_numbers<[1], [0], [0], [1], [0, 0, 1, 1], [], []>} : vector<3x6xbf16>, vector<6x96xbf16>, vector<3x96xf32> -> vector<3x96xf32>
    %154 = arith.truncf %153 : vector<3x96xf32> to vector<3x96xbf16>
    %c0_74 = arith.constant 0 : index
    %c0_75 = arith.constant 0 : index
    %c0_76 = arith.constant 0 : index
    %155 = vector.load %arg6[%c0_74, %c0_75, %c0_76] : memref<4x96x3xbf16, #tpu.memory_space<vmem>>, vector<1x96x3xbf16>
    %156 = vector.shape_cast %155 : vector<1x96x3xbf16> to vector<96x3xbf16>
    %cst_77 = arith.constant dense<0.000000e+00> : vector<3x3xf32>
    %157 = tpu.matmul %154, %156, %cst_77 {dimension_numbers = #tpu.dot_dimension_numbers<[1], [0], [0], [1], [0, 0, 1, 1], [], []>} : vector<3x96xbf16>, vector<96x3xbf16>, vector<3x3xf32> -> vector<3x3xf32>
    %158 = arith.addf %144, %157 : vector<3x3xf32>
    %c1_i32_78 = arith.constant 1 : i32
    %159 = vector.broadcast %c1_i32_78 : i32 to vector<3x6xi32>
    %160 = arith.muli %159, %142 : vector<3x6xi32>
    %c1_i32_79 = arith.constant 1 : i32
    %161 = vector.broadcast %c1_i32_79 : i32 to vector<3x6xi32>
    %162 = arith.addi %160, %161 : vector<3x6xi32>
    %163 = arith.cmpi eq, %143, %162 : vector<3x6xi32>
    %164 = arith.extui %163 : vector<3x6xi1> to vector<3x6xi32>
    %165 = arith.sitofp %164 : vector<3x6xi32> to vector<3x6xf32>
    %166 = arith.truncf %165 : vector<3x6xf32> to vector<3x6xbf16>
    %cst_80 = arith.constant dense<0.000000e+00> : vector<3x96xf32>
    %167 = tpu.matmul %166, %141, %cst_80 {dimension_numbers = #tpu.dot_dimension_numbers<[1], [0], [0], [1], [0, 0, 1, 1], [], []>} : vector<3x6xbf16>, vector<6x96xbf16>, vector<3x96xf32> -> vector<3x96xf32>
    %168 = arith.truncf %167 : vector<3x96xf32> to vector<3x96xbf16>
    %c1_81 = arith.constant 1 : index
    %c0_82 = arith.constant 0 : index
    %c0_83 = arith.constant 0 : index
    %169 = vector.load %arg6[%c1_81, %c0_82, %c0_83] : memref<4x96x3xbf16, #tpu.memory_space<vmem>>, vector<1x96x3xbf16>
    %170 = vector.shape_cast %169 : vector<1x96x3xbf16> to vector<96x3xbf16>
    %cst_84 = arith.constant dense<0.000000e+00> : vector<3x3xf32>
    %171 = tpu.matmul %168, %170, %cst_84 {dimension_numbers = #tpu.dot_dimension_numbers<[1], [0], [0], [1], [0, 0, 1, 1], [], []>} : vector<3x96xbf16>, vector<96x3xbf16>, vector<3x3xf32> -> vector<3x3xf32>
    %172 = arith.addf %158, %171 : vector<3x3xf32>
    %c1_i32_85 = arith.constant 1 : i32
    %173 = vector.broadcast %c1_i32_85 : i32 to vector<3x6xi32>
    %174 = arith.muli %173, %142 : vector<3x6xi32>
    %c2_i32_86 = arith.constant 2 : i32
    %175 = vector.broadcast %c2_i32_86 : i32 to vector<3x6xi32>
    %176 = arith.addi %174, %175 : vector<3x6xi32>
    %177 = arith.cmpi eq, %143, %176 : vector<3x6xi32>
    %178 = arith.extui %177 : vector<3x6xi1> to vector<3x6xi32>
    %179 = arith.sitofp %178 : vector<3x6xi32> to vector<3x6xf32>
    %180 = arith.truncf %179 : vector<3x6xf32> to vector<3x6xbf16>
    %cst_87 = arith.constant dense<0.000000e+00> : vector<3x96xf32>
    %181 = tpu.matmul %180, %141, %cst_87 {dimension_numbers = #tpu.dot_dimension_numbers<[1], [0], [0], [1], [0, 0, 1, 1], [], []>} : vector<3x6xbf16>, vector<6x96xbf16>, vector<3x96xf32> -> vector<3x96xf32>
    %182 = arith.truncf %181 : vector<3x96xf32> to vector<3x96xbf16>
    %c2_88 = arith.constant 2 : index
    %c0_89 = arith.constant 0 : index
    %c0_90 = arith.constant 0 : index
    %183 = vector.load %arg6[%c2_88, %c0_89, %c0_90] : memref<4x96x3xbf16, #tpu.memory_space<vmem>>, vector<1x96x3xbf16>
    %184 = vector.shape_cast %183 : vector<1x96x3xbf16> to vector<96x3xbf16>
    %cst_91 = arith.constant dense<0.000000e+00> : vector<3x3xf32>
    %185 = tpu.matmul %182, %184, %cst_91 {dimension_numbers = #tpu.dot_dimension_numbers<[1], [0], [0], [1], [0, 0, 1, 1], [], []>} : vector<3x96xbf16>, vector<96x3xbf16>, vector<3x3xf32> -> vector<3x3xf32>
    %186 = arith.addf %172, %185 : vector<3x3xf32>
    %c1_i32_92 = arith.constant 1 : i32
    %187 = vector.broadcast %c1_i32_92 : i32 to vector<3x6xi32>
    %188 = arith.muli %187, %142 : vector<3x6xi32>
    %c3_i32_93 = arith.constant 3 : i32
    %189 = vector.broadcast %c3_i32_93 : i32 to vector<3x6xi32>
    %190 = arith.addi %188, %189 : vector<3x6xi32>
    %191 = arith.cmpi eq, %143, %190 : vector<3x6xi32>
    %192 = arith.extui %191 : vector<3x6xi1> to vector<3x6xi32>
    %193 = arith.sitofp %192 : vector<3x6xi32> to vector<3x6xf32>
    %194 = arith.truncf %193 : vector<3x6xf32> to vector<3x6xbf16>
    %cst_94 = arith.constant dense<0.000000e+00> : vector<3x96xf32>
    %195 = tpu.matmul %194, %141, %cst_94 {dimension_numbers = #tpu.dot_dimension_numbers<[1], [0], [0], [1], [0, 0, 1, 1], [], []>} : vector<3x6xbf16>, vector<6x96xbf16>, vector<3x96xf32> -> vector<3x96xf32>
    %196 = arith.truncf %195 : vector<3x96xf32> to vector<3x96xbf16>
    %c3_95 = arith.constant 3 : index
    %c0_96 = arith.constant 0 : index
    %c0_97 = arith.constant 0 : index
    %197 = vector.load %arg6[%c3_95, %c0_96, %c0_97] : memref<4x96x3xbf16, #tpu.memory_space<vmem>>, vector<1x96x3xbf16>
    %198 = vector.shape_cast %197 : vector<1x96x3xbf16> to vector<96x3xbf16>
    %cst_98 = arith.constant dense<0.000000e+00> : vector<3x3xf32>
    %199 = tpu.matmul %196, %198, %cst_98 {dimension_numbers = #tpu.dot_dimension_numbers<[1], [0], [0], [1], [0, 0, 1, 1], [], []>} : vector<3x96xbf16>, vector<96x3xbf16>, vector<3x3xf32> -> vector<3x3xf32>
    %200 = arith.addf %186, %199 : vector<3x3xf32>
    %c0_99 = arith.constant 0 : index
    %c0_100 = arith.constant 0 : index
    %201 = vector.load %arg7[%c0_99, %c0_100] : memref<1x3xf32, #tpu.memory_space<vmem>>, vector<1x3xf32>
    %202 = vector.broadcast %201 : vector<1x3xf32> to vector<3x3xf32>
    %203 = arith.addf %200, %202 : vector<3x3xf32>
    %c0_101 = arith.constant 0 : index
    %c0_102 = arith.constant 0 : index
    %c0_103 = arith.constant 0 : index
    %204 = vector.load %arg8[%c0_101, %c0_102, %c0_103] : memref<1x3x3xf32, #tpu.memory_space<vmem>>, vector<1x3x3xf32>
    %205 = vector.shape_cast %204 : vector<1x3x3xf32> to vector<3x3xf32>
    %206 = vector.shape_cast %203 : vector<3x3xf32> to vector<1x3x3xf32>
    tpu.vector_store %arg8[%c0_101, %c0_102, %c0_103], %206 {strides = array<i32>} : memref<1x3x3xf32, #tpu.memory_space<vmem>>, vector<1x3x3xf32>,
    %cst_104 = arith.constant 1.000000e+00 : f32
    %207 = vector.broadcast %cst_104 : f32 to vector<3x3xf32>
    %208 = arith.subf %203, %207 : vector<3x3xf32>
    %209 = arith.mulf %208, %208 : vector<3x3xf32>
    %210 = vector.shape_cast %209 : vector<3x3xf32> to vector<1x3x3xf32>
    %cst_105 = arith.constant dense<0.000000e+00> : vector<1xf32>
    %211 = vector.multi_reduction <add>, %210, %cst_105 [1, 2] : vector<1x3x3xf32> to vector<1xf32>
    %212 = vector.shape_cast %211 : vector<1xf32> to vector<1x1x1xf32>
    %213 = vector.extract %212[0, 0, 0] : f32 from vector<1x1x1xf32>
    %214 = vector.broadcast %213 : f32 to vector<1x1xf32>
    %c0_106 = arith.constant 0 : index
    %c0_107 = arith.constant 0 : index
    %c0_108 = arith.constant 0 : index
    %215 = vector.load %arg9[%c0_106, %c0_107, %c0_108] : memref<1x1x2xf32, #tpu.memory_space<vmem>>, vector<1x1x1xf32>
    %216 = vector.shape_cast %215 : vector<1x1x1xf32> to vector<1x1xf32>
    %217 = vector.shape_cast %214 : vector<1x1xf32> to vector<1x1x1xf32>
    tpu.vector_store %arg9[%c0_106, %c0_107, %c0_108], %217 {strides = array<i32>} : memref<1x1x2xf32, #tpu.memory_space<vmem>>, vector<1x1x1xf32>,
    %218 = arith.mulf %203, %203 : vector<3x3xf32>
    %219 = vector.shape_cast %218 : vector<3x3xf32> to vector<1x3x3xf32>
    %cst_109 = arith.constant dense<0.000000e+00> : vector<1xf32>
    %220 = vector.multi_reduction <add>, %219, %cst_109 [1, 2] : vector<1x3x3xf32> to vector<1xf32>
    %221 = vector.shape_cast %220 : vector<1xf32> to vector<1x1x1xf32>
    %222 = vector.extract %221[0, 0, 0] : f32 from vector<1x1x1xf32>
    %223 = vector.broadcast %222 : f32 to vector<1x1xf32>
    %c0_110 = arith.constant 0 : index
    %c0_111 = arith.constant 0 : index
    %c1_112 = arith.constant 1 : index
    %224 = vector.load %arg9[%c0_110, %c0_111, %c1_112] : memref<1x1x2xf32, #tpu.memory_space<vmem>>, vector<1x1x1xf32>
    %225 = vector.shape_cast %224 : vector<1x1x1xf32> to vector<1x1xf32>
    %226 = vector.shape_cast %223 : vector<1x1xf32> to vector<1x1x1xf32>
    tpu.vector_store %arg9[%c0_110, %c0_111, %c1_112], %226 {strides = array<i32>} : memref<1x1x2xf32, #tpu.memory_space<vmem>>, vector<1x1x1xf32>,
    return
  }
  func.func @transform_0(%arg0: i32) -> (i32, i32, i32) {
    %c0_i32 = arith.constant 0 : i32
    %c0_i32_0 = arith.constant 0 : i32
    %c0_i32_1 = arith.constant 0 : i32
    return %arg0, %c0_i32, %c0_i32_0 : i32, i32, i32
  }
  func.func @transform_1(%arg0: i32) -> (i32, i32, i32) {
    %c0_i32 = arith.constant 0 : i32
    %c0_i32_0 = arith.constant 0 : i32
    %c0_i32_1 = arith.constant 0 : i32
    %c0_i32_2 = arith.constant 0 : i32
    return %c0_i32, %c0_i32_0, %c0_i32_1 : i32, i32, i32
  }
  func.func @transform_2(%arg0: i32) -> (i32, i32) {
    %c0_i32 = arith.constant 0 : i32
    %c0_i32_0 = arith.constant 0 : i32
    %c0_i32_1 = arith.constant 0 : i32
    return %c0_i32, %c0_i32_0 : i32, i32
  }
  func.func @transform_3(%arg0: i32) -> (i32, i32, i32) {
    %c0_i32 = arith.constant 0 : i32
    %c0_i32_0 = arith.constant 0 : i32
    %c0_i32_1 = arith.constant 0 : i32
    %c0_i32_2 = arith.constant 0 : i32
    return %c0_i32, %c0_i32_0, %c0_i32_1 : i32, i32, i32
  }
  func.func @transform_4(%arg0: i32) -> (i32, i32) {
    %c0_i32 = arith.constant 0 : i32
    %c0_i32_0 = arith.constant 0 : i32
    %c0_i32_1 = arith.constant 0 : i32
    return %c0_i32, %c0_i32_0 : i32, i32
  }
  func.func @transform_5(%arg0: i32) -> (i32, i32, i32) {
    %c0_i32 = arith.constant 0 : i32
    %c0_i32_0 = arith.constant 0 : i32
    %c0_i32_1 = arith.constant 0 : i32
    %c0_i32_2 = arith.constant 0 : i32
    return %c0_i32, %c0_i32_0, %c0_i32_1 : i32, i32, i32
  }
  func.func @transform_6(%arg0: i32) -> (i32, i32) {
    %c0_i32 = arith.constant 0 : i32
    %c0_i32_0 = arith.constant 0 : i32
    %c0_i32_1 = arith.constant 0 : i32
    return %c0_i32, %c0_i32_0 : i32, i32
  }
  func.func @transform_7(%arg0: i32) -> (i32, i32, i32) {
    %c0_i32 = arith.constant 0 : i32
    %c0_i32_0 = arith.constant 0 : i32
    %c0_i32_1 = arith.constant 0 : i32
    return %arg0, %c0_i32, %c0_i32_0 : i32, i32, i32
  }
  func.func @transform_8(%arg0: i32) -> (i32, i32, i32) {
    %c0_i32 = arith.constant 0 : i32
    %c0_i32_0 = arith.constant 0 : i32
    %c0_i32_1 = arith.constant 0 : i32
    return %arg0, %c0_i32, %c0_i32_0 : i32, i32, i32
  }
}

</mosaic_0001>

<llo_original>
// kernel: discriminator_forward.1
$region0: #{discriminator_forward.1}
  #allocation0 [shape = 'u32[]', space=smem, size = 0x4, offset = 0x4, fixed_abs, tag = 'smem constant byte address 0x4 - core index']
  #allocation1 [shape = 'u32[72,128]{1,0:T(1,128)}', space=vmem, size = 0x9000, scoped, tag = 'internal scratch']
  #allocation2 [shape = 'bf16[10,80]{1,0:T(8,128)(2,1)}', space=vmem, size = 0x1000, scoped, tag = 'scratch operand']
  #allocation3 [shape = 'bf16[6,96]{1,0:T(8,128)(2,1)}', space=vmem, size = 0x800, scoped, tag = 'scratch operand']
  %s0 = inlined_call_operand.vmem [shape: bf16[4,18,72], index: 0, kind: input, shape index: {}]
  %s1 = inlined_call_operand.vmem [shape: bf16[4,72,64], index: 1, kind: input, shape index: {}]
  %s2 = inlined_call_operand.vmem [shape: f32[1,64], index: 2, kind: input, shape index: {}]
  %s3 = inlined_call_operand.vmem [shape: bf16[4,80,64], index: 3, kind: input, shape index: {}]
  %s4 = inlined_call_operand.vmem [shape: f32[1,64], index: 4, kind: input, shape index: {}]
  %s5 = inlined_call_operand.vmem [shape: bf16[4,96,3], index: 5, kind: input, shape index: {}]
  %s6 = inlined_call_operand.vmem [shape: f32[1,3], index: 6, kind: input, shape index: {}]
  %s7 = inlined_call_operand.vmem [shape: f32[4,3,3], index: 7, kind: output, shape index: {0}]
  %s8 = inlined_call_operand.vmem [shape: f32[4,1,2], index: 8, kind: output, shape index: {1}]
  %9 = xla_tuple %s7, %s8
  %s10 = sld [smem:[#allocation0]]
  $region69: #{discriminator_forward.1} parent=0
    _
  %s12 = ssub.s32 1, %s10
  %s13 = scalar_select 0, %s12, %s10
  loop: start=0, step=1, limit=6
  $region2: #{discriminator_forward.1} parent=0 // loop_pre_header
    _
  $region3: #{discriminator_forward.1} parent=0 // loop_header
    %s15 = sphi 0, %s19
    %p16 = scmp.ge.s32.totalorder %s15, 6
    %s25 = sphi 0, %s27
    %s28 = sphi 0, %s25
    %s29 = sphi 0, %s28
    %s45 = sphi 0, %s29
    %s49 = sphi 0, %s49
    %s51 = sphi 0, %s49
    %s52 = sphi 0, %s51
    %s66 = sphi 0, %s52
    %s70 = sphi 0, %s70
    %s72 = sphi 0, %s70
    %s73 = sphi 0, %s72
    %s87 = sphi 0, %s73
    %s91 = sphi 0, %s91
    %s93 = sphi 0, %s91
    %s94 = sphi 0, %s93
    %s108 = sphi 0, %s94
    %s112 = sphi 0, %s112
    %s114 = sphi 0, %s112
    %s115 = sphi 0, %s114
    %s129 = sphi 0, %s115
    %s133 = sphi 0, %s133
    %s135 = sphi 0, %s133
    %s136 = sphi 0, %s135
    %s150 = sphi 0, %s136
    %s154 = sphi 0, %s154
    %s156 = sphi 0, %s154
    %s157 = sphi 0, %s156
    %s171 = sphi 0, %s157
    %s177 = sphi 0, %s179
    %s180 = sphi 0, %s177
    %s181 = sphi 0, %s180
    %s197 = sphi 0, %s181
    %s203 = sphi 0, %s205
    %s206 = sphi 0, %s203
    %s207 = sphi 0, %s206
    %s223 = sphi 0, %s207
  $region4: #{discriminator_forward.1} parent=0 // loop_header_branch
    %18 = sbr.rel (%p16) target = $region8
  $region5: #{discriminator_forward.1} parent=0 // loop_body
    %s20 = ssub.s32 %s15, 1
    %s21 = ssub.s32 %s15, 2
    %s22 = sadd.s32 %s15, 1
    %s23 = ssub.s32 %s15, %s22
    %p24 = scmp.eq.s32.totalorder %s23, 0
    %s26 = sadd.s32 %s25, 1
    %s27 = scalar_select %p24, %s25, %s26
    %p30 = pneg %p24
    %p31 = scmp.eq.s32.totalorder %s15, 3
    %p32 = por %p30, %p31
    %p33 = scmp.ne.s32.totalorder %s25, %s28
    %p34 = scmp.eq.s32.totalorder %s15, 0
    %p35 = por %p33, %p34
    %p36 = scmp.ne.s32.totalorder %s25, %s28
    %p37 = scmp.eq.s32.totalorder %s20, 3
    %p38 = por %p36, %p37
    %p39 = scmp.ne.s32.totalorder %s28, %s29
    %p40 = scmp.eq.s32.totalorder %s20, 0
    %p41 = por %p39, %p40
    %p42 = scmp.ne.s32.totalorder %s28, %s29
    %p43 = scmp.eq.s32.totalorder %s21, 3
    %p44 = por %p42, %p43
    %p46 = scmp.ne.s32.totalorder %s29, %s45
    %p47 = scmp.eq.s32.totalorder %s21, 0
    %p48 = por %p46, %p47
    %s50 = sadd.s32 %s49, 1
    %p53 = scmp.eq.s32.totalorder %s15, 3
    %p54 = scmp.ne.s32.totalorder %s49, %s51
    %p55 = scmp.eq.s32.totalorder %s15, 0
    %p56 = por %p54, %p55
    %p57 = scmp.ne.s32.totalorder %s49, %s51
    %p58 = scmp.eq.s32.totalorder %s20, 3
    %p59 = por %p57, %p58
    %p60 = scmp.ne.s32.totalorder %s51, %s52
    %p61 = scmp.eq.s32.totalorder %s20, 0
    %p62 = por %p60, %p61
    %p63 = scmp.ne.s32.totalorder %s51, %s52
    %p64 = scmp.eq.s32.totalorder %s21, 3
    %p65 = por %p63, %p64
    %p67 = scmp.ne.s32.totalorder %s52, %s66
    %p68 = scmp.eq.s32.totalorder %s21, 0
    %p69 = por %p67, %p68
    %s71 = sadd.s32 %s70, 1
    %p74 = scmp.eq.s32.totalorder %s15, 3
    %p75 = scmp.ne.s32.totalorder %s70, %s72
    %p76 = scmp.eq.s32.totalorder %s15, 0
    %p77 = por %p75, %p76
    %p78 = scmp.ne.s32.totalorder %s70, %s72
    %p79 = scmp.eq.s32.totalorder %s20, 3
    %p80 = por %p78, %p79
    %p81 = scmp.ne.s32.totalorder %s72, %s73
    %p82 = scmp.eq.s32.totalorder %s20, 0
    %p83 = por %p81, %p82
    %p84 = scmp.ne.s32.totalorder %s72, %s73
    %p85 = scmp.eq.s32.totalorder %s21, 3
    %p86 = por %p84, %p85
    %p88 = scmp.ne.s32.totalorder %s73, %s87
    %p89 = scmp.eq.s32.totalorder %s21, 0
    %p90 = por %p88, %p89
    %s92 = sadd.s32 %s91, 1
    %p95 = scmp.eq.s32.totalorder %s15, 3
    %p96 = scmp.ne.s32.totalorder %s91, %s93
    %p97 = scmp.eq.s32.totalorder %s15, 0
    %p98 = por %p96, %p97
    %p99 = scmp.ne.s32.totalorder %s91, %s93
    %p100 = scmp.eq.s32.totalorder %s20, 3
    %p101 = por %p99, %p100
    %p102 = scmp.ne.s32.totalorder %s93, %s94
    %p103 = scmp.eq.s32.totalorder %s20, 0
    %p104 = por %p102, %p103
    %p105 = scmp.ne.s32.totalorder %s93, %s94
    %p106 = scmp.eq.s32.totalorder %s21, 3
    %p107 = por %p105, %p106
    %p109 = scmp.ne.s32.totalorder %s94, %s108
    %p110 = scmp.eq.s32.totalorder %s21, 0
    %p111 = por %p109, %p110
    %s113 = sadd.s32 %s112, 1
    %p116 = scmp.eq.s32.totalorder %s15, 3
    %p117 = scmp.ne.s32.totalorder %s112, %s114
    %p118 = scmp.eq.s32.totalorder %s15, 0
    %p119 = por %p117, %p118
    %p120 = scmp.ne.s32.totalorder %s112, %s114
    %p121 = scmp.eq.s32.totalorder %s20, 3
    %p122 = por %p120, %p121
    %p123 = scmp.ne.s32.totalorder %s114, %s115
    %p124 = scmp.eq.s32.totalorder %s20, 0
    %p125 = por %p123, %p124
    %p126 = scmp.ne.s32.totalorder %s114, %s115
    %p127 = scmp.eq.s32.totalorder %s21, 3
    %p128 = por %p126, %p127
    %p130 = scmp.ne.s32.totalorder %s115, %s129
    %p131 = scmp.eq.s32.totalorder %s21, 0
    %p132 = por %p130, %p131
    %s134 = sadd.s32 %s133, 1
    %p137 = scmp.eq.s32.totalorder %s15, 3
    %p138 = scmp.ne.s32.totalorder %s133, %s135
    %p139 = scmp.eq.s32.totalorder %s15, 0
    %p140 = por %p138, %p139
    %p141 = scmp.ne.s32.totalorder %s133, %s135
    %p142 = scmp.eq.s32.totalorder %s20, 3
    %p143 = por %p141, %p142
    %p144 = scmp.ne.s32.totalorder %s135, %s136
    %p145 = scmp.eq.s32.totalorder %s20, 0
    %p146 = por %p144, %p145
    %p147 = scmp.ne.s32.totalorder %s135, %s136
    %p148 = scmp.eq.s32.totalorder %s21, 3
    %p149 = por %p147, %p148
    %p151 = scmp.ne.s32.totalorder %s136, %s150
    %p152 = scmp.eq.s32.totalorder %s21, 0
    %p153 = por %p151, %p152
    %s155 = sadd.s32 %s154, 1
    %p158 = scmp.eq.s32.totalorder %s15, 3
    %p159 = scmp.ne.s32.totalorder %s154, %s156
    %p160 = scmp.eq.s32.totalorder %s15, 0
    %p161 = por %p159, %p160
    %p162 = scmp.ne.s32.totalorder %s154, %s156
    %p163 = scmp.eq.s32.totalorder %s20, 3
    %p164 = por %p162, %p163
    %p165 = scmp.ne.s32.totalorder %s156, %s157
    %p166 = scmp.eq.s32.totalorder %s20, 0
    %p167 = por %p165, %p166
    %p168 = scmp.ne.s32.totalorder %s156, %s157
    %p169 = scmp.eq.s32.totalorder %s21, 3
    %p170 = por %p168, %p169
    %p172 = scmp.ne.s32.totalorder %s157, %s171
    %p173 = scmp.eq.s32.totalorder %s21, 0
    %p174 = por %p172, %p173
    %s175 = ssub.s32 %s15, %s22
    %p176 = scmp.eq.s32.totalorder %s175, 0
    %s178 = sadd.s32 %s177, 1
    %s179 = scalar_select %p176, %s177, %s178
    %p182 = pneg %p176
    %p183 = scmp.eq.s32.totalorder %s15, 3
    %p184 = por %p182, %p183
    %p185 = scmp.ne.s32.totalorder %s177, %s180
    %p186 = scmp.eq.s32.totalorder %s15, 0
    %p187 = por %p185, %p186
    %p188 = scmp.ne.s32.totalorder %s177, %s180
    %p189 = scmp.eq.s32.totalorder %s20, 3
    %p190 = por %p188, %p189
    %p191 = scmp.ne.s32.totalorder %s180, %s181
    %p192 = scmp.eq.s32.totalorder %s20, 0
    %p193 = por %p191, %p192
    %p194 = scmp.ne.s32.totalorder %s180, %s181
    %p195 = scmp.eq.s32.totalorder %s21, 3
    %p196 = por %p194, %p195
    %p198 = scmp.ne.s32.totalorder %s181, %s197
    %p199 = scmp.eq.s32.totalorder %s21, 0
    %p200 = por %p198, %p199
    %s201 = ssub.s32 %s15, %s22
    %p202 = scmp.eq.s32.totalorder %s201, 0
    %s204 = sadd.s32 %s203, 1
    %s205 = scalar_select %p202, %s203, %s204
    %p208 = pneg %p202
    %p209 = scmp.eq.s32.totalorder %s15, 3
    %p210 = por %p208, %p209
    %p211 = scmp.ne.s32.totalorder %s203, %s206
    %p212 = scmp.eq.s32.totalorder %s15, 0
    %p213 = por %p211, %p212
    %p214 = scmp.ne.s32.totalorder %s203, %s206
    %p215 = scmp.eq.s32.totalorder %s20, 3
    %p216 = por %p214, %p215
    %p217 = scmp.ne.s32.totalorder %s206, %s207
    %p218 = scmp.eq.s32.totalorder %s20, 0
    %p219 = por %p217, %p218
    %p220 = scmp.ne.s32.totalorder %s206, %s207
    %p221 = scmp.eq.s32.totalorder %s21, 3
    %p222 = por %p220, %p221
    %p224 = scmp.ne.s32.totalorder %s207, %s223
    %p225 = scmp.eq.s32.totalorder %s21, 0
    %p226 = por %p224, %p225
    %p227 = scmp.le.s32.totalorder 1, %s15
    %p228 = scmp.lt.s32.totalorder %s15, 5
    %p229 = pnand %p227, %p228
    %p230 = pneg %p229
    // Predicated region
    $region9: #{discriminator_forward.1} parent=5 // pred_check
      _
    $region10: #{discriminator_forward.1} parent=5 // pred_check_branch
      %232 = sbr.rel (%p229) target = $region12
    $region11: #{discriminator_forward.1} parent=5 // pred_region
      %s233 = ssub.s32 %s15, 1
      // Predicated region
      $region13: #{discriminator_forward.1} parent=11 // pred_check
        %p234 = pneg %p62
      $region14: #{discriminator_forward.1} parent=11 // pred_check_branch
        %236 = sbr.rel (%p234) target = $region16
      $region15: #{discriminator_forward.1} parent=11 // pred_region
        _
      $region16: #{discriminator_forward.1} parent=11 // pred_fallthru
        _
      // Predicated region
      $region17: #{discriminator_forward.1} parent=11 // pred_check
        %p237 = pneg %p83
      $region18: #{discriminator_forward.1} parent=11 // pred_check_branch
        %239 = sbr.rel (%p237) target = $region20
      $region19: #{discriminator_forward.1} parent=11 // pred_region
        _
      $region20: #{discriminator_forward.1} parent=11 // pred_fallthru
        _
      // Predicated region
      $region21: #{discriminator_forward.1} parent=11 // pred_check
        %p240 = pneg %p104
      $region22: #{discriminator_forward.1} parent=11 // pred_check_branch
        %242 = sbr.rel (%p240) target = $region24
      $region23: #{discriminator_forward.1} parent=11 // pred_region
        _
      $region24: #{discriminator_forward.1} parent=11 // pred_fallthru
        _
      // Predicated region
      $region25: #{discriminator_forward.1} parent=11 // pred_check
        %p243 = pneg %p125
      $region26: #{discriminator_forward.1} parent=11 // pred_check_branch
        %245 = sbr.rel (%p243) target = $region28
      $region27: #{discriminator_forward.1} parent=11 // pred_region
        _
      $region28: #{discriminator_forward.1} parent=11 // pred_fallthru
        _
      // Predicated region
      $region29: #{discriminator_forward.1} parent=11 // pred_check
        %p246 = pneg %p146
      $region30: #{discriminator_forward.1} parent=11 // pred_check_branch
        %248 = sbr.rel (%p246) target = $region32
      $region31: #{discriminator_forward.1} parent=11 // pred_region
        _
      $region32: #{discriminator_forward.1} parent=11 // pred_fallthru
        _
      // Predicated region
      $region33: #{discriminator_forward.1} parent=11 // pred_check
        %p249 = pneg %p167
      $region34: #{discriminator_forward.1} parent=11 // pred_check_branch
        %251 = sbr.rel (%p249) target = $region36
      $region35: #{discriminator_forward.1} parent=11 // pred_region
        _
      $region36: #{discriminator_forward.1} parent=11 // pred_fallthru
        _
    $region12: #{discriminator_forward.1} parent=5 // pred_fallthru
      _
    %p252 = scmp.lt.s32.totalorder %s15, 4
    // Predicated region
    $region37: #{discriminator_forward.1} parent=5 // pred_check
      %p253 = pneg %p252
    $region38: #{discriminator_forward.1} parent=5 // pred_check_branch
      %255 = sbr.rel (%p253) target = $region40
    $region39: #{discriminator_forward.1} parent=5 // pred_region
      // Predicated region
      $region41: #{discriminator_forward.1} parent=39 // pred_check
        %p256 = pneg %p35
      $region42: #{discriminator_forward.1} parent=39 // pred_check_branch
        %258 = sbr.rel (%p256) target = $region44
      $region43: #{discriminator_forward.1} parent=39 // pred_region
        %p259 = scmp.lt.s32.totalorder %s15, 3
        %s260 = scalar_select %p259, %s15, 3
        %s261 = smul.addr %s260, 3
        %s262 = smul.addr %s261, 4
        %s263 = scalar_lea.vmem %s0, %s262
      $region44: #{discriminator_forward.1} parent=39 // pred_fallthru
        _
    $region40: #{discriminator_forward.1} parent=5 // pred_fallthru
      _
    %p264 = scmp.le.s32.totalorder 1, %s15
    %p265 = scmp.lt.s32.totalorder %s15, 5
    %p266 = pnand %p264, %p265
    %p267 = pneg %p266
    // Predicated region
    $region45: #{discriminator_forward.1} parent=5 // pred_check
      _
    $region46: #{discriminator_forward.1} parent=5 // pred_check_branch
      %269 = sbr.rel (%p266) target = $region48
    $region47: #{discriminator_forward.1} parent=5 // pred_region
      %s270 = ssub.s32 %s15, 1
      %p271 = scmp.lt.s32.totalorder %s20, 3
      %s272 = scalar_select %p271, %s20, 3
      %s273 = smul.addr %s272, 3
      %s274 = smul.addr %s273, 4
      %s275 = scalar_lea.vmem %s0, %s274
      %p276 = pneg %p41
      %p277 = pneg %p38
      %p278 = pneg %p62
      %p279 = pneg %p59
      %p280 = pneg %p83
      %p281 = pneg %p80
      %p282 = pneg %p104
      %p283 = pneg %p101
      %p284 = pneg %p125
      %p285 = pneg %p122
      %p286 = pneg %p146
      %p287 = pneg %p143
      %p288 = pneg %p167
      %p289 = pneg %p164
      %p290 = pneg %p193
      %p291 = pneg %p190
      %p292 = scmp.lt.s32.totalorder %s20, 3
      %s293 = scalar_select %p292, %s20, 3
      %s294 = smul.addr %s293, 4
      %s295 = scalar_lea.vmem %s7, %s294
      %p296 = pneg %p219
      %p297 = pneg %p216
      %p298 = scmp.lt.s32.totalorder %s20, 3
      %s299 = scalar_select %p298, %s20, 3
      %s300 = scalar_lea.vmem %s8, %s299
      %p301 = scmp.lt.s32.totalorder %s20, 3
      %s302 = scalar_select %p301, %s20, 3
      %s303 = smul.addr %s302, 3
      %s304 = smul.addr %s303, 4
      %s305 = scalar_lea.vmem %s0, %s304
      %p306 = scmp.lt.s32.totalorder %s20, 3
      %s307 = scalar_select %p306, %s20, 3
      %s308 = smul.addr %s307, 4
      %s309 = scalar_lea.vmem %s7, %s308
      %p310 = scmp.lt.s32.totalorder %s20, 3
      %s311 = scalar_select %p310, %s20, 3
      %s312 = scalar_lea.vmem %s8, %s311
      %v314 = vld [vmem:[%s305] sm:$0xf]
      %v315 = vld [vmem:[%s305 + $0x4] sm:$0xf]
      %v316 = vld [vmem:[%s305 + $0x8] sm:$0x1]
      %v317 = vlaneseq
      %v318 = vshrl.u32 %v317, 7
      %v319 = vlaneseq
      %v320 = vand.u32 %v319, 127
      %v321 = vmul.u32 %v318, 2
      %vm322 = vcmp.eq.s32.totalorder %v320, %v321
      %v323 = vsel %vm322, 1, 0
      %v324 = vcvt.s32.f32 %v323
      %v325 = vpack.c.bf16 %v324, %v324
      %v329 = vunpack.c.l.b16 %v314
      %v330 = vunpack.c.l.b16 %v315
      %v331 = vunpack.c.l.b16 %v316
      %v332 = vpack.c.b16 %v330, %v329
      %v333 = vpack.c.b16 %v331, %v331
      %vm335 = vcmask 146432
      %v337 = vsel %vm335, %v325, 0
      %vm339 = vcmask 1040384
      %v341 = vsel %vm339, %v333, 0
      %343 = vmatpush.bf16.msra.mxu0 0
      %344 = vmatpush.bf16.msra.mxu0 0
      %345 = vmatpush.bf16.msra.mxu0 0
      %346 = vmatpush.bf16.msra.mxu0 0
      %347 = vmatpush.bf16.msra.mxu0 0
      %348 = vmatpush.bf16.msra.mxu0 0
      %349 = vmatpush.bf16.msra.mxu0 %v341
      %350 = vmatpush.bf16.msra.mxu0 %v332
      %351 = vmatmul.bf16.gmra.mxu0 %v337
      %v352 = vpop.f32.mrf.mxu0
      %v353 = vadd.f32 0.0, %v352
      %v354 = vpop.f32.mrf.mxu0
      %355 = vdwg.mxu0
      %v356 = vpack.c.bf16 %v353, %v353
      %v357 = vld [vmem:[%s1] sm:$0xf]
      %v358 = vld [vmem:[%s1 + $0x4] sm:$0xf]
      %v359 = vld [vmem:[%s1 + $0x8] sm:$0xf]
      %v360 = vld [vmem:[%s1 + $0xc] sm:$0xf]
      %v361 = vld [vmem:[%s1 + $0x10] sm:$0xf]
      %v362 = vld [vmem:[%s1 + $0x14] sm:$0xf]
      %v363 = vld [vmem:[%s1 + $0x18] sm:$0xf]
      %v364 = vld [vmem:[%s1 + $0x1c] sm:$0xf]
      %v365 = vld [vmem:[%s1 + $0x20] sm:$0xf]
      %v366 = vadd.s32 %v321, 1
      %vm367 = vcmp.eq.s32.totalorder %v320, %v366
      %v368 = vsel %vm367, 1, 0
      %v369 = vcvt.s32.f32 %v368
      %v370 = vpack.c.bf16 %v369, %v369
      %v372 = vsel %vm335, %v370, 0
      %374 = vmatpush.bf16.msra.mxu0 0
      %375 = vmatpush.bf16.msra.mxu0 0
      %376 = vmatpush.bf16.msra.mxu0 0
      %377 = vmatpush.bf16.msra.mxu0 0
      %378 = vmatpush.bf16.msra.mxu0 0
      %379 = vmatpush.bf16.msra.mxu0 0
      %380 = vmatpush.bf16.msra.mxu0 %v341
      %381 = vmatpush.bf16.msra.mxu0 %v332
      %382 = vmatmul.bf16.gmra.mxu0 %v372
      %v383 = vpop.f32.mrf.mxu0
      %v384 = vadd.f32 0.0, %v383
      %v385 = vpop.f32.mrf.mxu0
      %386 = vdwg.mxu0
      %v387 = vpack.c.bf16 %v384, %v384
      %s388 = scalar_lea.vmem %s1, 36
      %v389 = vld [vmem:[%s388] sm:$0xf]
      %v390 = vld [vmem:[%s388 + $0x4] sm:$0xf]
      %v391 = vld [vmem:[%s388 + $0x8] sm:$0xf]
      %v392 = vld [vmem:[%s388 + $0xc] sm:$0xf]
      %v393 = vld [vmem:[%s388 + $0x10] sm:$0xf]
      %v394 = vld [vmem:[%s388 + $0x14] sm:$0xf]
      %v395 = vld [vmem:[%s388 + $0x18] sm:$0xf]
      %v396 = vld [vmem:[%s388 + $0x1c] sm:$0xf]
      %v397 = vld [vmem:[%s388 + $0x20] sm:$0xf]
      %v407 = vunpack.c.l.b16 %v389
      %v408 = vunpack.c.l.b16 %v390
      %v409 = vunpack.c.l.b16 %v391
      %v410 = vunpack.c.l.b16 %v392
      %v411 = vunpack.c.l.b16 %v393
      %v412 = vunpack.c.l.b16 %v394
      %v413 = vunpack.c.l.b16 %v395
      %v414 = vunpack.c.l.b16 %v396
      %v415 = vunpack.c.l.b16 %v397
      %v416 = vpack.c.b16 %v408, %v407
      %v417 = vpack.c.b16 %v410, %v409
      %v418 = vpack.c.b16 %v412, %v411
      %v419 = vpack.c.b16 %v414, %v413
      %v420 = vpack.c.b16 %v415, %v415
      %vm425 = vcmask 588800
      %v427 = vsel %vm425, %v387, 0
      %vm429 = vcmask 1043456
      %v431 = vsel %vm429, %v420, 0
      %433 = vmatpush.bf16.msra.mxu0 0
      %434 = vmatpush.bf16.msra.mxu0 0
      %435 = vmatpush.bf16.msra.mxu0 0
      %436 = vmatpush.bf16.msra.mxu0 %v431
      %437 = vmatpush.bf16.msra.mxu0 %v419
      %438 = vmatpush.bf16.msra.mxu0 %v418
      %439 = vmatpush.bf16.msra.mxu0 %v417
      %440 = vmatpush.bf16.msra.mxu0 %v416
      %441 = vmatmul.bf16.gmra.mxu0 %v427
      %v442 = vpop.f32.mrf.mxu0
      %v443 = vadd.f32 0.0, %v442
      %v444 = vpop.f32.mrf.mxu0
      %445 = vdwg.mxu0
      %v455 = vunpack.c.l.b16 %v357
      %v456 = vunpack.c.l.b16 %v358
      %v457 = vunpack.c.l.b16 %v359
      %v458 = vunpack.c.l.b16 %v360
      %v459 = vunpack.c.l.b16 %v361
      %v460 = vunpack.c.l.b16 %v362
      %v461 = vunpack.c.l.b16 %v363
      %v462 = vunpack.c.l.b16 %v364
      %v463 = vunpack.c.l.b16 %v365
      %v464 = vpack.c.b16 %v456, %v455
      %v465 = vpack.c.b16 %v458, %v457
      %v466 = vpack.c.b16 %v460, %v459
      %v467 = vpack.c.b16 %v462, %v461
      %v468 = vpack.c.b16 %v463, %v463
      %v474 = vsel %vm425, %v356, 0
      %v477 = vsel %vm429, %v468, 0
      %479 = vmatpush.bf16.msra.mxu0 0
      %480 = vmatpush.bf16.msra.mxu0 0
      %481 = vmatpush.bf16.msra.mxu0 0
      %482 = vmatpush.bf16.msra.mxu0 %v477
      %483 = vmatpush.bf16.msra.mxu0 %v467
      %484 = vmatpush.bf16.msra.mxu0 %v466
      %485 = vmatpush.bf16.msra.mxu0 %v465
      %486 = vmatpush.bf16.msra.mxu0 %v464
      %487 = vmatmul.bf16.gmra.mxu0 %v474
      %v488 = vpop.f32.mrf.mxu0
      %v489 = vadd.f32 %v443, %v488
      %v490 = vpop.f32.mrf.mxu0
      %491 = vdwg.mxu0
      %v492 = vadd.s32 %v321, 2
      %vm493 = vcmp.eq.s32.totalorder %v320, %v492
      %v494 = vsel %vm493, 1, 0
      %v495 = vcvt.s32.f32 %v494
      %v496 = vpack.c.bf16 %v495, %v495
      %v498 = vsel %vm335, %v496, 0
      %500 = vmatpush.bf16.msra.mxu0 0
      %501 = vmatpush.bf16.msra.mxu0 0
      %502 = vmatpush.bf16.msra.mxu0 0
      %503 = vmatpush.bf16.msra.mxu0 0
      %504 = vmatpush.bf16.msra.mxu0 0
      %505 = vmatpush.bf16.msra.mxu0 0
      %506 = vmatpush.bf16.msra.mxu0 %v341
      %507 = vmatpush.bf16.msra.mxu0 %v332
      %508 = vmatmul.bf16.gmra.mxu0 %v498
      %v509 = vpop.f32.mrf.mxu0
      %v510 = vadd.f32 0.0, %v509
      %v511 = vpop.f32.mrf.mxu0
      %512 = vdwg.mxu0
      %v513 = vpack.c.bf16 %v510, %v510
      %s514 = scalar_lea.vmem %s1, 72
      %v515 = vld [vmem:[%s514] sm:$0xf]
      %v516 = vld [vmem:[%s514 + $0x4] sm:$0xf]
      %v517 = vld [vmem:[%s514 + $0x8] sm:$0xf]
      %v518 = vld [vmem:[%s514 + $0xc] sm:$0xf]
      %v519 = vld [vmem:[%s514 + $0x10] sm:$0xf]
      %v520 = vld [vmem:[%s514 + $0x14] sm:$0xf]
      %v521 = vld [vmem:[%s514 + $0x18] sm:$0xf]
      %v522 = vld [vmem:[%s514 + $0x1c] sm:$0xf]
      %v523 = vld [vmem:[%s514 + $0x20] sm:$0xf]
      %v533 = vunpack.c.l.b16 %v515
      %v534 = vunpack.c.l.b16 %v516
      %v535 = vunpack.c.l.b16 %v517
      %v536 = vunpack.c.l.b16 %v518
      %v537 = vunpack.c.l.b16 %v519
      %v538 = vunpack.c.l.b16 %v520
      %v539 = vunpack.c.l.b16 %v521
      %v540 = vunpack.c.l.b16 %v522
      %v541 = vunpack.c.l.b16 %v523
      %v542 = vpack.c.b16 %v534, %v533
      %v543 = vpack.c.b16 %v536, %v535
      %v544 = vpack.c.b16 %v538, %v537
      %v545 = vpack.c.b16 %v540, %v539
      %v546 = vpack.c.b16 %v541, %v541
      %v552 = vsel %vm425, %v513, 0
      %v555 = vsel %vm429, %v546, 0
      %557 = vmatpush.bf16.msra.mxu0 0
      %558 = vmatpush.bf16.msra.mxu0 0
      %559 = vmatpush.bf16.msra.mxu0 0
      %560 = vmatpush.bf16.msra.mxu0 %v555
      %561 = vmatpush.bf16.msra.mxu0 %v545
      %562 = vmatpush.bf16.msra.mxu0 %v544
      %563 = vmatpush.bf16.msra.mxu0 %v543
      %564 = vmatpush.bf16.msra.mxu0 %v542
      %565 = vmatmul.bf16.gmra.mxu0 %v552
      %v566 = vpop.f32.mrf.mxu0
      %v567 = vadd.f32 0.0, %v566
      %v568 = vpop.f32.mrf.mxu0
      %569 = vdwg.mxu0
      %v570 = vadd.f32 %v489, %v567
      %v571 = vadd.s32 %v321, 3
      %vm572 = vcmp.eq.s32.totalorder %v320, %v571
      %v573 = vsel %vm572, 1, 0
      %v574 = vcvt.s32.f32 %v573
      %v575 = vpack.c.bf16 %v574, %v574
      %v577 = vsel %vm335, %v575, 0
      %579 = vmatpush.bf16.msra.mxu0 0
      %580 = vmatpush.bf16.msra.mxu0 0
      %581 = vmatpush.bf16.msra.mxu0 0
      %582 = vmatpush.bf16.msra.mxu0 0
      %583 = vmatpush.bf16.msra.mxu0 0
      %584 = vmatpush.bf16.msra.mxu0 0
      %585 = vmatpush.bf16.msra.mxu0 %v341
      %586 = vmatpush.bf16.msra.mxu0 %v332
      %587 = vmatmul.bf16.gmra.mxu0 %v577
      %v588 = vpop.f32.mrf.mxu0
      %v589 = vadd.f32 0.0, %v588
      %v590 = vpop.f32.mrf.mxu0
      %591 = vdwg.mxu0
      %v592 = vpack.c.bf16 %v589, %v589
      %s593 = scalar_lea.vmem %s1, 108
      %v594 = vld [vmem:[%s593] sm:$0xf]
      %v595 = vld [vmem:[%s593 + $0x4] sm:$0xf]
      %v596 = vld [vmem:[%s593 + $0x8] sm:$0xf]
      %v597 = vld [vmem:[%s593 + $0xc] sm:$0xf]
      %v598 = vld [vmem:[%s593 + $0x10] sm:$0xf]
      %v599 = vld [vmem:[%s593 + $0x14] sm:$0xf]
      %v600 = vld [vmem:[%s593 + $0x18] sm:$0xf]
      %v601 = vld [vmem:[%s593 + $0x1c] sm:$0xf]
      %v602 = vld [vmem:[%s593 + $0x20] sm:$0xf]
      %v612 = vunpack.c.l.b16 %v594
      %v613 = vunpack.c.l.b16 %v595
      %v614 = vunpack.c.l.b16 %v596
      %v615 = vunpack.c.l.b16 %v597
      %v616 = vunpack.c.l.b16 %v598
      %v617 = vunpack.c.l.b16 %v599
      %v618 = vunpack.c.l.b16 %v600
      %v619 = vunpack.c.l.b16 %v601
      %v620 = vunpack.c.l.b16 %v602
      %v621 = vpack.c.b16 %v613, %v612
      %v622 = vpack.c.b16 %v615, %v614
      %v623 = vpack.c.b16 %v617, %v616
      %v624 = vpack.c.b16 %v619, %v618
      %v625 = vpack.c.b16 %v620, %v620
      %v631 = vsel %vm425, %v592, 0
      %v634 = vsel %vm429, %v625, 0
      %636 = vmatpush.bf16.msra.mxu0 0
      %637 = vmatpush.bf16.msra.mxu0 0
      %638 = vmatpush.bf16.msra.mxu0 0
      %639 = vmatpush.bf16.msra.mxu0 %v634
      %640 = vmatpush.bf16.msra.mxu0 %v624
      %641 = vmatpush.bf16.msra.mxu0 %v623
      %642 = vmatpush.bf16.msra.mxu0 %v622
      %643 = vmatpush.bf16.msra.mxu0 %v621
      %644 = vmatmul.bf16.gmra.mxu0 %v631
      %v645 = vpop.f32.mrf.mxu0
      %v646 = vadd.f32 0.0, %v645
      %v647 = vpop.f32.mrf.mxu0
      %648 = vdwg.mxu0
      %v649 = vadd.f32 %v570, %v646
      %v650 = vld [vmem:[%s2] sm:$0x1]
      %v652 = vperm.slane %v650, 0
      %v654 = vadd.f32 %v649, %v652
      %v655 = vmul.f32 %v654, 0.2
      %v656 = vmax.f32 %v654, %v655
      %vm657 = vcmask 650240
      %658 = vst.msk [vmem:[#allocation2] sm:$0xf] %vm657, 0
      %vm659 = vcmask 647168
      %660 = vst.msk [vmem:[#allocation2 + $0x4] sm:$0x1] %vm659, 0
      %v661 = vpack.c.bf16 %v656, %v656
      %v663 = vshrl.u32 %v661, 16
      %v665 = vrot.slane %v663, 7
      %v666 = vshll.u32 %v661, 16
      %v668 = vor.u32 %v665, %v666
      %v669 = vrot.slane %v665, 4
      %670 = vrot.lane.b32.xlu0 %v668, 8
      %v671 = vpop.permute.xlu0 %670
      %672 = vrot.lane.b32.xlu0 %v669, 8
      %v673 = vpop.permute.xlu0 %672
      %vm676 = vcmask 584768
      %vm677 = vsmask.f32 7938
      %vm678 = vmand %vm676, %vm677
      %v679 = vld [vmem:[#allocation2] sm:$0xf]
      %v680 = vsel %vm678, %v671, %v679
      %681 = vst [vmem:[#allocation2] sm:$0xf] %v680
      %vm682 = vcmask 581696
      %vm683 = vsmask.f32 256
      %vm684 = vmand %vm682, %vm683
      %v685 = vld [vmem:[#allocation2 + $0x4] sm:$0x1]
      %v686 = vsel %vm684, %v673, %v685
      %687 = vst [vmem:[#allocation2 + $0x4] sm:$0x1] %v686
      %v688 = vld [vmem:[#allocation2] sm:$0xf]
      %v689 = vld [vmem:[#allocation2 + $0x4] sm:$0x1]
      %v692 = vunpack.c.l.b16 %v688
      %v693 = vunpack.c.l.b16 %v689
      %v694 = vpack.c.b16 %v693, %v692
      %vm695 = vcmask 80896
      %v696 = vsel %vm695, %v325, 0
      %vm698 = vcmask 1044480
      %v700 = vsel %vm698, %v694, 0
      %702 = vmatpush.bf16.msra.mxu0 0
      %703 = vmatpush.bf16.msra.mxu0 0
      %704 = vmatpush.bf16.msra.mxu0 0
      %705 = vmatpush.bf16.msra.mxu0 0
      %706 = vmatpush.bf16.msra.mxu0 0
      %707 = vmatpush.bf16.msra.mxu0 0
      %708 = vmatpush.bf16.msra.mxu0 0
      %709 = vmatpush.bf16.msra.mxu0 %v700
      %710 = vmatmul.bf16.gmra.mxu0 %v696
      %v711 = vpop.f32.mrf.mxu0
      %v712 = vadd.f32 0.0, %v711
      %v713 = vpop.f32.mrf.mxu0
      %714 = vdwg.mxu0
      %v715 = vpack.c.bf16 %v712, %v712
      %v716 = vld [vmem:[%s3] sm:$0xf]
      %v717 = vld [vmem:[%s3 + $0x4] sm:$0xf]
      %v718 = vld [vmem:[%s3 + $0x8] sm:$0xf]
      %v719 = vld [vmem:[%s3 + $0xc] sm:$0xf]
      %v720 = vld [vmem:[%s3 + $0x10] sm:$0xf]
      %v721 = vld [vmem:[%s3 + $0x14] sm:$0xf]
      %v722 = vld [vmem:[%s3 + $0x18] sm:$0xf]
      %v723 = vld [vmem:[%s3 + $0x1c] sm:$0xf]
      %v724 = vld [vmem:[%s3 + $0x20] sm:$0xf]
      %v725 = vld [vmem:[%s3 + $0x24] sm:$0xf]
      %v726 = vsel %vm695, %v370, 0
      %728 = vmatpush.bf16.msra.mxu0 0
      %729 = vmatpush.bf16.msra.mxu0 0
      %730 = vmatpush.bf16.msra.mxu0 0
      %731 = vmatpush.bf16.msra.mxu0 0
      %732 = vmatpush.bf16.msra.mxu0 0
      %733 = vmatpush.bf16.msra.mxu0 0
      %734 = vmatpush.bf16.msra.mxu0 0
      %735 = vmatpush.bf16.msra.mxu0 %v700
      %736 = vmatmul.bf16.gmra.mxu0 %v726
      %v737 = vpop.f32.mrf.mxu0
      %v738 = vadd.f32 0.0, %v737
      %v739 = vpop.f32.mrf.mxu0
      %740 = vdwg.mxu0
      %v741 = vpack.c.bf16 %v738, %v738
      %s742 = scalar_lea.vmem %s3, 40
      %v743 = vld [vmem:[%s742] sm:$0xf]
      %v744 = vld [vmem:[%s742 + $0x4] sm:$0xf]
      %v745 = vld [vmem:[%s742 + $0x8] sm:$0xf]
      %v746 = vld [vmem:[%s742 + $0xc] sm:$0xf]
      %v747 = vld [vmem:[%s742 + $0x10] sm:$0xf]
      %v748 = vld [vmem:[%s742 + $0x14] sm:$0xf]
      %v749 = vld [vmem:[%s742 + $0x18] sm:$0xf]
      %v750 = vld [vmem:[%s742 + $0x1c] sm:$0xf]
      %v751 = vld [vmem:[%s742 + $0x20] sm:$0xf]
      %v752 = vld [vmem:[%s742 + $0x24] sm:$0xf]
      %v763 = vunpack.c.l.b16 %v743
      %v764 = vunpack.c.l.b16 %v744
      %v765 = vunpack.c.l.b16 %v745
      %v766 = vunpack.c.l.b16 %v746
      %v767 = vunpack.c.l.b16 %v747
      %v768 = vunpack.c.l.b16 %v748
      %v769 = vunpack.c.l.b16 %v749
      %v770 = vunpack.c.l.b16 %v750
      %v771 = vunpack.c.l.b16 %v751
      %v772 = vunpack.c.l.b16 %v752
      %v773 = vpack.c.b16 %v764, %v763
      %v774 = vpack.c.b16 %v766, %v765
      %v775 = vpack.c.b16 %v768, %v767
      %v776 = vpack.c.b16 %v770, %v769
      %v777 = vpack.c.b16 %v772, %v771
      %vm783 = vcmask 654336
      %v785 = vsel %vm783, %v741, 0
      %787 = vmatpush.bf16.msra.mxu0 0
      %788 = vmatpush.bf16.msra.mxu0 0
      %789 = vmatpush.bf16.msra.mxu0 0
      %790 = vmatpush.bf16.msra.mxu0 %v777
      %791 = vmatpush.bf16.msra.mxu0 %v776
      %792 = vmatpush.bf16.msra.mxu0 %v775
      %793 = vmatpush.bf16.msra.mxu0 %v774
      %794 = vmatpush.bf16.msra.mxu0 %v773
      %795 = vmatmul.bf16.gmra.mxu0 %v785
      %v796 = vpop.f32.mrf.mxu0
      %v797 = vadd.f32 0.0, %v796
      %v798 = vpop.f32.mrf.mxu0
      %799 = vdwg.mxu0
      %v810 = vunpack.c.l.b16 %v716
      %v811 = vunpack.c.l.b16 %v717
      %v812 = vunpack.c.l.b16 %v718
      %v813 = vunpack.c.l.b16 %v719
      %v814 = vunpack.c.l.b16 %v720
      %v815 = vunpack.c.l.b16 %v721
      %v816 = vunpack.c.l.b16 %v722
      %v817 = vunpack.c.l.b16 %v723
      %v818 = vunpack.c.l.b16 %v724
      %v819 = vunpack.c.l.b16 %v725
      %v820 = vpack.c.b16 %v811, %v810
      %v821 = vpack.c.b16 %v813, %v812
      %v822 = vpack.c.b16 %v815, %v814
      %v823 = vpack.c.b16 %v817, %v816
      %v824 = vpack.c.b16 %v819, %v818
      %v831 = vsel %vm783, %v715, 0
      %833 = vmatpush.bf16.msra.mxu0 0
      %834 = vmatpush.bf16.msra.mxu0 0
      %835 = vmatpush.bf16.msra.mxu0 0
      %836 = vmatpush.bf16.msra.mxu0 %v824
      %837 = vmatpush.bf16.msra.mxu0 %v823
      %838 = vmatpush.bf16.msra.mxu0 %v822
      %839 = vmatpush.bf16.msra.mxu0 %v821
      %840 = vmatpush.bf16.msra.mxu0 %v820
      %841 = vmatmul.bf16.gmra.mxu0 %v831
      %v842 = vpop.f32.mrf.mxu0
      %v843 = vadd.f32 %v797, %v842
      %v844 = vpop.f32.mrf.mxu0
      %845 = vdwg.mxu0
      %v846 = vsel %vm695, %v496, 0
      %848 = vmatpush.bf16.msra.mxu0 0
      %849 = vmatpush.bf16.msra.mxu0 0
      %850 = vmatpush.bf16.msra.mxu0 0
      %851 = vmatpush.bf16.msra.mxu0 0
      %852 = vmatpush.bf16.msra.mxu0 0
      %853 = vmatpush.bf16.msra.mxu0 0
      %854 = vmatpush.bf16.msra.mxu0 0
      %855 = vmatpush.bf16.msra.mxu0 %v700
      %856 = vmatmul.bf16.gmra.mxu0 %v846
      %v857 = vpop.f32.mrf.mxu0
      %v858 = vadd.f32 0.0, %v857
      %v859 = vpop.f32.mrf.mxu0
      %860 = vdwg.mxu0
      %v861 = vpack.c.bf16 %v858, %v858
      %s862 = scalar_lea.vmem %s3, 80
      %v863 = vld [vmem:[%s862] sm:$0xf]
      %v864 = vld [vmem:[%s862 + $0x4] sm:$0xf]
      %v865 = vld [vmem:[%s862 + $0x8] sm:$0xf]
      %v866 = vld [vmem:[%s862 + $0xc] sm:$0xf]
      %v867 = vld [vmem:[%s862 + $0x10] sm:$0xf]
      %v868 = vld [vmem:[%s862 + $0x14] sm:$0xf]
      %v869 = vld [vmem:[%s862 + $0x18] sm:$0xf]
      %v870 = vld [vmem:[%s862 + $0x1c] sm:$0xf]
      %v871 = vld [vmem:[%s862 + $0x20] sm:$0xf]
      %v872 = vld [vmem:[%s862 + $0x24] sm:$0xf]
      %v883 = vunpack.c.l.b16 %v863
      %v884 = vunpack.c.l.b16 %v864
      %v885 = vunpack.c.l.b16 %v865
      %v886 = vunpack.c.l.b16 %v866
      %v887 = vunpack.c.l.b16 %v867
      %v888 = vunpack.c.l.b16 %v868
      %v889 = vunpack.c.l.b16 %v869
      %v890 = vunpack.c.l.b16 %v870
      %v891 = vunpack.c.l.b16 %v871
      %v892 = vunpack.c.l.b16 %v872
      %v893 = vpack.c.b16 %v884, %v883
      %v894 = vpack.c.b16 %v886, %v885
      %v895 = vpack.c.b16 %v888, %v887
      %v896 = vpack.c.b16 %v890, %v889
      %v897 = vpack.c.b16 %v892, %v891
      %v904 = vsel %vm783, %v861, 0
      %906 = vmatpush.bf16.msra.mxu0 0
      %907 = vmatpush.bf16.msra.mxu0 0
      %908 = vmatpush.bf16.msra.mxu0 0
      %909 = vmatpush.bf16.msra.mxu0 %v897
      %910 = vmatpush.bf16.msra.mxu0 %v896
      %911 = vmatpush.bf16.msra.mxu0 %v895
      %912 = vmatpush.bf16.msra.mxu0 %v894
      %913 = vmatpush.bf16.msra.mxu0 %v893
      %914 = vmatmul.bf16.gmra.mxu0 %v904
      %v915 = vpop.f32.mrf.mxu0
      %v916 = vadd.f32 0.0, %v915
      %v917 = vpop.f32.mrf.mxu0
      %918 = vdwg.mxu0
      %v919 = vadd.f32 %v843, %v916
      %v920 = vsel %vm695, %v575, 0
      %922 = vmatpush.bf16.msra.mxu0 0
      %923 = vmatpush.bf16.msra.mxu0 0
      %924 = vmatpush.bf16.msra.mxu0 0
      %925 = vmatpush.bf16.msra.mxu0 0
      %926 = vmatpush.bf16.msra.mxu0 0
      %927 = vmatpush.bf16.msra.mxu0 0
      %928 = vmatpush.bf16.msra.mxu0 0
      %929 = vmatpush.bf16.msra.mxu0 %v700
      %930 = vmatmul.bf16.gmra.mxu0 %v920
      %v931 = vpop.f32.mrf.mxu0
      %v932 = vadd.f32 0.0, %v931
      %v933 = vpop.f32.mrf.mxu0
      %934 = vdwg.mxu0
      %v935 = vpack.c.bf16 %v932, %v932
      %s936 = scalar_lea.vmem %s3, 120
      %v937 = vld [vmem:[%s936] sm:$0xf]
      %v938 = vld [vmem:[%s936 + $0x4] sm:$0xf]
      %v939 = vld [vmem:[%s936 + $0x8] sm:$0xf]
      %v940 = vld [vmem:[%s936 + $0xc] sm:$0xf]
      %v941 = vld [vmem:[%s936 + $0x10] sm:$0xf]
      %v942 = vld [vmem:[%s936 + $0x14] sm:$0xf]
      %v943 = vld [vmem:[%s936 + $0x18] sm:$0xf]
      %v944 = vld [vmem:[%s936 + $0x1c] sm:$0xf]
      %v945 = vld [vmem:[%s936 + $0x20] sm:$0xf]
      %v946 = vld [vmem:[%s936 + $0x24] sm:$0xf]
      %v957 = vunpack.c.l.b16 %v937
      %v958 = vunpack.c.l.b16 %v938
      %v959 = vunpack.c.l.b16 %v939
      %v960 = vunpack.c.l.b16 %v940
      %v961 = vunpack.c.l.b16 %v941
      %v962 = vunpack.c.l.b16 %v942
      %v963 = vunpack.c.l.b16 %v943
      %v964 = vunpack.c.l.b16 %v944
      %v965 = vunpack.c.l.b16 %v945
      %v966 = vunpack.c.l.b16 %v946
      %v967 = vpack.c.b16 %v958, %v957
      %v968 = vpack.c.b16 %v960, %v959
      %v969 = vpack.c.b16 %v962, %v961
      %v970 = vpack.c.b16 %v964, %v963
      %v971 = vpack.c.b16 %v966, %v965
      %v978 = vsel %vm783, %v935, 0
      %980 = vmatpush.bf16.msra.mxu0 0
      %981 = vmatpush.bf16.msra.mxu0 0
      %982 = vmatpush.bf16.msra.mxu0 0
      %983 = vmatpush.bf16.msra.mxu0 %v971
      %984 = vmatpush.bf16.msra.mxu0 %v970
      %985 = vmatpush.bf16.msra.mxu0 %v969
      %986 = vmatpush.bf16.msra.mxu0 %v968
      %987 = vmatpush.bf16.msra.mxu0 %v967
      %988 = vmatmul.bf16.gmra.mxu0 %v978
      %v989 = vpop.f32.mrf.mxu0
      %v990 = vadd.f32 0.0, %v989
      %v991 = vpop.f32.mrf.mxu0
      %992 = vdwg.mxu0
      %v993 = vadd.f32 %v919, %v990
      %v994 = vld [vmem:[%s4] sm:$0x1]
      %v996 = vperm.slane %v994, 0
      %v998 = vadd.f32 %v993, %v996
      %v999 = vmul.f32 %v998, 0.2
      %v1000 = vmax.f32 %v998, %v999
      %vm1001 = vcmask 780288
      %1002 = vst.msk [vmem:[#allocation3] sm:$0x7] %vm1001, 0
      %v1003 = vpack.c.bf16 %v1000, %v1000
      %v1005 = vshrl.u32 %v1003, 16
      %v1007 = vrot.slane %v1005, 7
      %v1008 = vshll.u32 %v1003, 16
      %v1010 = vor.u32 %v1007, %v1008
      %1011 = vrot.lane.b32.xlu0 %v1010, 16
      %v1012 = vpop.permute.xlu0 %1011
      %vm1014 = vcmask 649344
      %vm1015 = vsmask.f32 2306
      %vm1016 = vmand %vm1014, %vm1015
      %v1017 = vld [vmem:[#allocation3] sm:$0x7]
      %v1018 = vsel %vm1016, %v1012, %v1017
      %1019 = vst [vmem:[#allocation3] sm:$0x7] %v1018
      %v1020 = vld [vmem:[#allocation3] sm:$0x7]
      %vm1021 = vcmp.eq.s32.totalorder %v320, %v318
      %v1022 = vsel %vm1021, 1, 0
      %v1023 = vcvt.s32.f32 %v1022
      %v1024 = vpack.c.bf16 %v1023, %v1023
      %vm1025 = vcmask 48128
      %v1027 = vsel %vm1025, %v1024, 0
      %vm1029 = vcmask 1042432
      %v1031 = vsel %vm1029, %v1020, 0
      %1033 = vmatpush.bf16.msra.mxu0 0
      %1034 = vmatpush.bf16.msra.mxu0 0
      %1035 = vmatpush.bf16.msra.mxu0 0
      %1036 = vmatpush.bf16.msra.mxu0 0
      %1037 = vmatpush.bf16.msra.mxu0 0
      %1038 = vmatpush.bf16.msra.mxu0 0
      %1039 = vmatpush.bf16.msra.mxu0 0
      %1040 = vmatpush.bf16.msra.mxu0 %v1031
      %1041 = vmatmul.bf16.gmra.mxu0 %v1027
      %v1042 = vpop.f32.mrf.mxu0
      %v1043 = vadd.f32 0.0, %v1042
      %v1044 = vpop.f32.mrf.mxu0
      %1045 = vdwg.mxu0
      %v1046 = vpack.c.bf16 %v1043, %v1043
      %v1047 = vld [vmem:[%s5] sm:$0xf]
      %v1048 = vld [vmem:[%s5 + $0x4] sm:$0xf]
      %v1049 = vld [vmem:[%s5 + $0x8] sm:$0xf]
      %v1050 = vld [vmem:[%s5 + $0xc] sm:$0xf]
      %v1051 = vld [vmem:[%s5 + $0x10] sm:$0xf]
      %v1052 = vld [vmem:[%s5 + $0x14] sm:$0xf]
      %v1053 = vld [vmem:[%s5 + $0x18] sm:$0xf]
      %v1054 = vld [vmem:[%s5 + $0x1c] sm:$0xf]
      %v1055 = vld [vmem:[%s5 + $0x20] sm:$0xf]
      %v1056 = vld [vmem:[%s5 + $0x24] sm:$0xf]
      %v1057 = vld [vmem:[%s5 + $0x28] sm:$0xf]
      %v1058 = vld [vmem:[%s5 + $0x2c] sm:$0xf]
      %v1059 = vadd.s32 %v318, 1
      %vm1060 = vcmp.eq.s32.totalorder %v320, %v1059
      %v1061 = vsel %vm1060, 1, 0
      %v1062 = vcvt.s32.f32 %v1061
      %v1063 = vpack.c.bf16 %v1062, %v1062
      %v1065 = vsel %vm1025, %v1063, 0
      %1067 = vmatpush.bf16.msra.mxu0 0
      %1068 = vmatpush.bf16.msra.mxu0 0
      %1069 = vmatpush.bf16.msra.mxu0 0
      %1070 = vmatpush.bf16.msra.mxu0 0
      %1071 = vmatpush.bf16.msra.mxu0 0
      %1072 = vmatpush.bf16.msra.mxu0 0
      %1073 = vmatpush.bf16.msra.mxu0 0
      %1074 = vmatpush.bf16.msra.mxu0 %v1031
      %1075 = vmatmul.bf16.gmra.mxu0 %v1065
      %v1076 = vpop.f32.mrf.mxu0
      %v1077 = vadd.f32 0.0, %v1076
      %v1078 = vpop.f32.mrf.mxu0
      %1079 = vdwg.mxu0
      %v1080 = vpack.c.bf16 %v1077, %v1077
      %s1081 = scalar_lea.vmem %s5, 48
      %v1082 = vld [vmem:[%s1081] sm:$0xf]
      %v1083 = vld [vmem:[%s1081 + $0x4] sm:$0xf]
      %v1084 = vld [vmem:[%s1081 + $0x8] sm:$0xf]
      %v1085 = vld [vmem:[%s1081 + $0xc] sm:$0xf]
      %v1086 = vld [vmem:[%s1081 + $0x10] sm:$0xf]
      %v1087 = vld [vmem:[%s1081 + $0x14] sm:$0xf]
      %v1088 = vld [vmem:[%s1081 + $0x18] sm:$0xf]
      %v1089 = vld [vmem:[%s1081 + $0x1c] sm:$0xf]
      %v1090 = vld [vmem:[%s1081 + $0x20] sm:$0xf]
      %v1091 = vld [vmem:[%s1081 + $0x24] sm:$0xf]
      %v1092 = vld [vmem:[%s1081 + $0x28] sm:$0xf]
      %v1093 = vld [vmem:[%s1081 + $0x2c] sm:$0xf]
      %v1106 = vunpack.c.l.b16 %v1082
      %v1107 = vunpack.c.l.b16 %v1083
      %v1108 = vunpack.c.l.b16 %v1084
      %v1109 = vunpack.c.l.b16 %v1085
      %v1110 = vunpack.c.l.b16 %v1086
      %v1111 = vunpack.c.l.b16 %v1087
      %v1112 = vunpack.c.l.b16 %v1088
      %v1113 = vunpack.c.l.b16 %v1089
      %v1114 = vunpack.c.l.b16 %v1090
      %v1115 = vunpack.c.l.b16 %v1091
      %v1116 = vunpack.c.l.b16 %v1092
      %v1117 = vunpack.c.l.b16 %v1093
      %v1118 = vpack.c.b16 %v1107, %v1106
      %v1119 = vpack.c.b16 %v1109, %v1108
      %v1120 = vpack.c.b16 %v1111, %v1110
      %v1121 = vpack.c.b16 %v1113, %v1112
      %v1122 = vpack.c.b16 %v1115, %v1114
      %v1123 = vpack.c.b16 %v1117, %v1116
      %vm1130 = vcmask 785408
      %v1132 = vsel %vm1130, %v1080, 0
      %1134 = vmatpush.bf16.msra.mxu0 0
      %1135 = vmatpush.bf16.msra.mxu0 0
      %1136 = vmatpush.bf16.msra.mxu0 %v1123
      %1137 = vmatpush.bf16.msra.mxu0 %v1122
      %1138 = vmatpush.bf16.msra.mxu0 %v1121
      %1139 = vmatpush.bf16.msra.mxu0 %v1120
      %1140 = vmatpush.bf16.msra.mxu0 %v1119
      %1141 = vmatpush.bf16.msra.mxu0 %v1118
      %1142 = vmatmul.bf16.gmra.mxu0 %v1132
      %v1143 = vpop.f32.mrf.mxu0
      %v1144 = vadd.f32 0.0, %v1143
      %v1145 = vpop.f32.mrf.mxu0
      %1146 = vdwg.mxu0
      %v1159 = vunpack.c.l.b16 %v1047
      %v1160 = vunpack.c.l.b16 %v1048
      %v1161 = vunpack.c.l.b16 %v1049
      %v1162 = vunpack.c.l.b16 %v1050
      %v1163 = vunpack.c.l.b16 %v1051
      %v1164 = vunpack.c.l.b16 %v1052
      %v1165 = vunpack.c.l.b16 %v1053
      %v1166 = vunpack.c.l.b16 %v1054
      %v1167 = vunpack.c.l.b16 %v1055
      %v1168 = vunpack.c.l.b16 %v1056
      %v1169 = vunpack.c.l.b16 %v1057
      %v1170 = vunpack.c.l.b16 %v1058
      %v1171 = vpack.c.b16 %v1160, %v1159
      %v1172 = vpack.c.b16 %v1162, %v1161
      %v1173 = vpack.c.b16 %v1164, %v1163
      %v1174 = vpack.c.b16 %v1166, %v1165
      %v1175 = vpack.c.b16 %v1168, %v1167
      %v1176 = vpack.c.b16 %v1170, %v1169
      %v1184 = vsel %vm1130, %v1046, 0
      %1186 = vmatpush.bf16.msra.mxu0 0
      %1187 = vmatpush.bf16.msra.mxu0 0
      %1188 = vmatpush.bf16.msra.mxu0 %v1176
      %1189 = vmatpush.bf16.msra.mxu0 %v1175
      %1190 = vmatpush.bf16.msra.mxu0 %v1174
      %1191 = vmatpush.bf16.msra.mxu0 %v1173
      %1192 = vmatpush.bf16.msra.mxu0 %v1172
      %1193 = vmatpush.bf16.msra.mxu0 %v1171
      %1194 = vmatmul.bf16.gmra.mxu0 %v1184
      %v1195 = vpop.f32.mrf.mxu0
      %v1196 = vadd.f32 %v1144, %v1195
      %v1197 = vpop.f32.mrf.mxu0
      %1198 = vdwg.mxu0
      %v1199 = vadd.s32 %v318, 2
      %vm1200 = vcmp.eq.s32.totalorder %v320, %v1199
      %v1201 = vsel %vm1200, 1, 0
      %v1202 = vcvt.s32.f32 %v1201
      %v1203 = vpack.c.bf16 %v1202, %v1202
      %v1205 = vsel %vm1025, %v1203, 0
      %1207 = vmatpush.bf16.msra.mxu0 0
      %1208 = vmatpush.bf16.msra.mxu0 0
      %1209 = vmatpush.bf16.msra.mxu0 0
      %1210 = vmatpush.bf16.msra.mxu0 0
      %1211 = vmatpush.bf16.msra.mxu0 0
      %1212 = vmatpush.bf16.msra.mxu0 0
      %1213 = vmatpush.bf16.msra.mxu0 0
      %1214 = vmatpush.bf16.msra.mxu0 %v1031
      %1215 = vmatmul.bf16.gmra.mxu0 %v1205
      %v1216 = vpop.f32.mrf.mxu0
      %v1217 = vadd.f32 0.0, %v1216
      %v1218 = vpop.f32.mrf.mxu0
      %1219 = vdwg.mxu0
      %v1220 = vpack.c.bf16 %v1217, %v1217
      %s1221 = scalar_lea.vmem %s5, 96
      %v1222 = vld [vmem:[%s1221] sm:$0xf]
      %v1223 = vld [vmem:[%s1221 + $0x4] sm:$0xf]
      %v1224 = vld [vmem:[%s1221 + $0x8] sm:$0xf]
      %v1225 = vld [vmem:[%s1221 + $0xc] sm:$0xf]
      %v1226 = vld [vmem:[%s1221 + $0x10] sm:$0xf]
      %v1227 = vld [vmem:[%s1221 + $0x14] sm:$0xf]
      %v1228 = vld [vmem:[%s1221 + $0x18] sm:$0xf]
      %v1229 = vld [vmem:[%s1221 + $0x1c] sm:$0xf]
      %v1230 = vld [vmem:[%s1221 + $0x20] sm:$0xf]
      %v1231 = vld [vmem:[%s1221 + $0x24] sm:$0xf]
      %v1232 = vld [vmem:[%s1221 + $0x28] sm:$0xf]
      %v1233 = vld [vmem:[%s1221 + $0x2c] sm:$0xf]
      %v1246 = vunpack.c.l.b16 %v1222
      %v1247 = vunpack.c.l.b16 %v1223
      %v1248 = vunpack.c.l.b16 %v1224
      %v1249 = vunpack.c.l.b16 %v1225
      %v1250 = vunpack.c.l.b16 %v1226
      %v1251 = vunpack.c.l.b16 %v1227
      %v1252 = vunpack.c.l.b16 %v1228
      %v1253 = vunpack.c.l.b16 %v1229
      %v1254 = vunpack.c.l.b16 %v1230
      %v1255 = vunpack.c.l.b16 %v1231
      %v1256 = vunpack.c.l.b16 %v1232
      %v1257 = vunpack.c.l.b16 %v1233
      %v1258 = vpack.c.b16 %v1247, %v1246
      %v1259 = vpack.c.b16 %v1249, %v1248
      %v1260 = vpack.c.b16 %v1251, %v1250
      %v1261 = vpack.c.b16 %v1253, %v1252
      %v1262 = vpack.c.b16 %v1255, %v1254
      %v1263 = vpack.c.b16 %v1257, %v1256
      %v1271 = vsel %vm1130, %v1220, 0
      %1273 = vmatpush.bf16.msra.mxu0 0
      %1274 = vmatpush.bf16.msra.mxu0 0
      %1275 = vmatpush.bf16.msra.mxu0 %v1263
      %1276 = vmatpush.bf16.msra.mxu0 %v1262
      %1277 = vmatpush.bf16.msra.mxu0 %v1261
      %1278 = vmatpush.bf16.msra.mxu0 %v1260
      %1279 = vmatpush.bf16.msra.mxu0 %v1259
      %1280 = vmatpush.bf16.msra.mxu0 %v1258
      %1281 = vmatmul.bf16.gmra.mxu0 %v1271
      %v1282 = vpop.f32.mrf.mxu0
      %v1283 = vadd.f32 0.0, %v1282
      %v1284 = vpop.f32.mrf.mxu0
      %1285 = vdwg.mxu0
      %v1286 = vadd.f32 %v1196, %v1283
      %v1287 = vadd.s32 %v318, 3
      %vm1288 = vcmp.eq.s32.totalorder %v320, %v1287
      %v1289 = vsel %vm1288, 1, 0
      %v1290 = vcvt.s32.f32 %v1289
      %v1291 = vpack.c.bf16 %v1290, %v1290
      %v1293 = vsel %vm1025, %v1291, 0
      %1295 = vmatpush.bf16.msra.mxu0 0
      %1296 = vmatpush.bf16.msra.mxu0 0
      %1297 = vmatpush.bf16.msra.mxu0 0
      %1298 = vmatpush.bf16.msra.mxu0 0
      %1299 = vmatpush.bf16.msra.mxu0 0
      %1300 = vmatpush.bf16.msra.mxu0 0
      %1301 = vmatpush.bf16.msra.mxu0 0
      %1302 = vmatpush.bf16.msra.mxu0 %v1031
      %1303 = vmatmul.bf16.gmra.mxu0 %v1293
      %v1304 = vpop.f32.mrf.mxu0
      %v1305 = vadd.f32 0.0, %v1304
      %v1306 = vpop.f32.mrf.mxu0
      %1307 = vdwg.mxu0
      %v1308 = vpack.c.bf16 %v1305, %v1305
      %s1309 = scalar_lea.vmem %s5, 144
      %v1310 = vld [vmem:[%s1309] sm:$0xf]
      %v1311 = vld [vmem:[%s1309 + $0x4] sm:$0xf]
      %v1312 = vld [vmem:[%s1309 + $0x8] sm:$0xf]
      %v1313 = vld [vmem:[%s1309 + $0xc] sm:$0xf]
      %v1314 = vld [vmem:[%s1309 + $0x10] sm:$0xf]
      %v1315 = vld [vmem:[%s1309 + $0x14] sm:$0xf]
      %v1316 = vld [vmem:[%s1309 + $0x18] sm:$0xf]
      %v1317 = vld [vmem:[%s1309 + $0x1c] sm:$0xf]
      %v1318 = vld [vmem:[%s1309 + $0x20] sm:$0xf]
      %v1319 = vld [vmem:[%s1309 + $0x24] sm:$0xf]
      %v1320 = vld [vmem:[%s1309 + $0x28] sm:$0xf]
      %v1321 = vld [vmem:[%s1309 + $0x2c] sm:$0xf]
      %v1334 = vunpack.c.l.b16 %v1310
      %v1335 = vunpack.c.l.b16 %v1311
      %v1336 = vunpack.c.l.b16 %v1312
      %v1337 = vunpack.c.l.b16 %v1313
      %v1338 = vunpack.c.l.b16 %v1314
      %v1339 = vunpack.c.l.b16 %v1315
      %v1340 = vunpack.c.l.b16 %v1316
      %v1341 = vunpack.c.l.b16 %v1317
      %v1342 = vunpack.c.l.b16 %v1318
      %v1343 = vunpack.c.l.b16 %v1319
      %v1344 = vunpack.c.l.b16 %v1320
      %v1345 = vunpack.c.l.b16 %v1321
      %v1346 = vpack.c.b16 %v1335, %v1334
      %v1347 = vpack.c.b16 %v1337, %v1336
      %v1348 = vpack.c.b16 %v1339, %v1338
      %v1349 = vpack.c.b16 %v1341, %v1340
      %v1350 = vpack.c.b16 %v1343, %v1342
      %v1351 = vpack.c.b16 %v1345, %v1344
      %v1359 = vsel %vm1130, %v1308, 0
      %1361 = vmatpush.bf16.msra.mxu0 0
      %1362 = vmatpush.bf16.msra.mxu0 0
      %1363 = vmatpush.bf16.msra.mxu0 %v1351
      %1364 = vmatpush.bf16.msra.mxu0 %v1350
      %1365 = vmatpush.bf16.msra.mxu0 %v1349
      %1366 = vmatpush.bf16.msra.mxu0 %v1348
      %1367 = vmatpush.bf16.msra.mxu0 %v1347
      %1368 = vmatpush.bf16.msra.mxu0 %v1346
      %1369 = vmatmul.bf16.gmra.mxu0 %v1359
      %v1370 = vpop.f32.mrf.mxu0
      %v1371 = vadd.f32 0.0, %v1370
      %v1372 = vpop.f32.mrf.mxu0
      %1373 = vdwg.mxu0
      %v1374 = vadd.f32 %v1286, %v1371
      %v1375 = vld [vmem:[%s6] sm:$0x1]
      %v1377 = vperm.slane %v1375, 0
      %v1379 = vadd.f32 %v1374, %v1377
      %vm1380 = vcmask 18432
      %1381 = vst.msk [vmem:[%s309] sm:$0x7] %vm1380, %v1379
      %v1382 = vsub.f32 %v1379, 1.0
      %v1383 = vmul.f32 %v1382, %v1382
      %v1384 = vsel %vm1380, %v1383, 0.0
      %1385 = vadd.xlane.f32.xlu0 %v1384
      %v1386 = vpop.xlane.xlu0 %1385
      %v1387 = vrot.slane %v1386, 4
      %v1388 = vadd.f32 %v1386, %v1387
      %v1389 = vrot.slane %v1388, 2
      %v1390 = vadd.f32 %v1388, %v1389
      %v1391 = vrot.slane %v1390, 1
      %v1392 = vadd.f32 %v1390, %v1391
      %s1393 = vtos %v1392
      %v1394 = vstv %s1393
      %vm1395 = vcmask 0
      %1396 = vst.msk [vmem:[%s312] sm:$0x1] %vm1395, %v1394
      %v1397 = vmul.f32 %v1379, %v1379
      %v1398 = vsel %vm1380, %v1397, 0.0
      %1399 = vadd.xlane.f32.xlu0 %v1398
      %v1400 = vpop.xlane.xlu0 %1399
      %v1401 = vrot.slane %v1400, 4
      %v1402 = vadd.f32 %v1400, %v1401
      %v1403 = vrot.slane %v1402, 2
      %v1404 = vadd.f32 %v1402, %v1403
      %v1405 = vrot.slane %v1404, 1
      %v1406 = vadd.f32 %v1404, %v1405
      %s1407 = vtos %v1406
      %v1408 = vstv %s1407
      %vm1409 = vcmask 8200
      %1410 = vst.msk [vmem:[%s312] sm:$0x1] %vm1409, %v1408
      %p1411 = scmp.lt.s32.totalorder %s20, 3
      %s1412 = scalar_select %p1411, %s20, 3
      %s1413 = smul.addr %s1412, 4
      %s1414 = scalar_lea.vmem %s7, %s1413
      %p1415 = scmp.lt.s32.totalorder %s20, 3
      %s1416 = scalar_select %p1415, %s20, 3
      %s1417 = scalar_lea.vmem %s8, %s1416
      // Predicated region
      $region49: #{discriminator_forward.1} parent=47 // pred_check
        %p1418 = pneg %p190
      $region50: #{discriminator_forward.1} parent=47 // pred_check_branch
        %1420 = sbr.rel (%p1418) target = $region52
      $region51: #{discriminator_forward.1} parent=47 // pred_region
        _
      $region52: #{discriminator_forward.1} parent=47 // pred_fallthru
        _
      // Predicated region
      $region53: #{discriminator_forward.1} parent=47 // pred_check
        %p1421 = pneg %p216
      $region54: #{discriminator_forward.1} parent=47 // pred_check_branch
        %1423 = sbr.rel (%p1421) target = $region56
      $region55: #{discriminator_forward.1} parent=47 // pred_region
        _
      $region56: #{discriminator_forward.1} parent=47 // pred_fallthru
        _
    $region48: #{discriminator_forward.1} parent=5 // pred_fallthru
      _
    %p1424 = scmp.le.s32.totalorder 2, %s15
    // Predicated region
    $region57: #{discriminator_forward.1} parent=5 // pred_check
      %p1425 = pneg %p1424
    $region58: #{discriminator_forward.1} parent=5 // pred_check_branch
      %1427 = sbr.rel (%p1425) target = $region60
    $region59: #{discriminator_forward.1} parent=5 // pred_region
      %s1428 = ssub.s32 %s15, 2
      // Predicated region
      $region61: #{discriminator_forward.1} parent=59 // pred_check
        %p1429 = pneg %p196
      $region62: #{discriminator_forward.1} parent=59 // pred_check_branch
        %1431 = sbr.rel (%p1429) target = $region64
      $region63: #{discriminator_forward.1} parent=59 // pred_region
        %p1432 = scmp.lt.s32.totalorder %s21, 3
        %s1433 = scalar_select %p1432, %s21, 3
        %s1434 = smul.addr %s1433, 4
        %s1435 = scalar_lea.vmem %s7, %s1434
      $region64: #{discriminator_forward.1} parent=59 // pred_fallthru
        _
      // Predicated region
      $region65: #{discriminator_forward.1} parent=59 // pred_check
        %p1436 = pneg %p222
      $region66: #{discriminator_forward.1} parent=59 // pred_check_branch
        %1438 = sbr.rel (%p1436) target = $region68
      $region67: #{discriminator_forward.1} parent=59 // pred_region
        %p1439 = scmp.lt.s32.totalorder %s21, 3
        %s1440 = scalar_select %p1439, %s21, 3
        %s1441 = scalar_lea.vmem %s8, %s1440
      $region68: #{discriminator_forward.1} parent=59 // pred_fallthru
        _
    $region60: #{discriminator_forward.1} parent=5 // pred_fallthru
      _
  $region6: #{discriminator_forward.1} parent=0 // loop_footer
    %s19 = sadd.s32 1, %s15
  $region7: #{discriminator_forward.1} parent=0 // loop_footer_branch
    %14 = sbr.rel target = $region3
  $region8: #{discriminator_forward.1} parent=0 // loop_exit
    _

</llo_original>
